<compile_context>
chip_gen: v7x
topology: tpu7x:2x2x1
jax: 0.10.0
libtpu: 0.0.40
codegen_flags: <defaults>
</compile_context>

<pallas_src>
import jax
import jax.numpy as jnp
from jax.experimental import pallas as pl
from jax.experimental.pallas import tpu as pltpu

BN_EPS = 1e-5


def _round_up(x, m):
    return ((x + m - 1) // m) * m


# --------------------------------------------------------------------------- #
# Kernel: 3 MXU matmuls + per-channel f32 scale/bias + 2 ReLUs.
# (Dropout is identity in eval mode.)
# --------------------------------------------------------------------------- #
def _mlp_kernel(x_ref, w1_ref, s1_ref, b1_ref, w2_ref, s2_ref, b2_ref,
                w3_ref, b3_ref, o_ref):
    x = x_ref[...].astype(jnp.bfloat16)                       # cast in-kernel (free VPU op)

    h = jnp.dot(x, w1_ref[...], preferred_element_type=jnp.float32)
    h = h * s1_ref[...] + b1_ref[...]                         # folded BN (f32 path)
    h = jnp.maximum(h, 0.0).astype(jnp.bfloat16)
    # TODO(synk): Dropout(0.3) in training mode would need pltpu.prng_*; eval mode is identity.

    h = jnp.dot(h, w2_ref[...], preferred_element_type=jnp.float32)
    h = h * s2_ref[...] + b2_ref[...]
    h = jnp.maximum(h, 0.0).astype(jnp.bfloat16)

    out = jnp.dot(h, w3_ref[...], preferred_element_type=jnp.float32) + b3_ref[...]
    o_ref[...] = out.astype(o_ref.dtype)


# --------------------------------------------------------------------------- #
# One-time packing: fold BN into (scale, bias), pad hidden dims, cast weights.
# Call this ONCE when params change; not on the serving path.
# --------------------------------------------------------------------------- #
def pack_params(params):
    w1, b1 = params["w1"], params["b1"]
    w2, b2 = params["w2"], params["b2"]
    w3, b3 = params["w3"], params["b3"]

    s1 = params["g1"] * jax.lax.rsqrt(params["var1"] + BN_EPS)        # [1, H1]
    b1f = (b1 - params["mu1"]) * s1 + params["beta1"]
    s2 = params["g2"] * jax.lax.rsqrt(params["var2"] + BN_EPS)        # [1, H2]
    b2f = (b2 - params["mu2"]) * s2 + params["beta2"]

    h1 = w1.shape[1]
    h2 = w2.shape[1]
    d_out = w3.shape[1]

    def _pad_hidden(d):
        # 256-alignment feeds the full 256x256 MXU on v6e/v7x for real hidden
        # sizes; toy sizes (<=128) stay one 128-lane tile (ideal on v5e too).
        return _round_up(d, 256) if d > 128 else _round_up(d, 128)

    hp1, hp2 = _pad_hidden(h1), _pad_hidden(h2)

    def pad_cols(a, cols):
        return jnp.pad(a, ((0, 0), (0, cols - a.shape[1])))

    def pad2(a, rows, cols):
        return jnp.pad(a, ((0, rows - a.shape[0]), (0, cols - a.shape[1])))

    # Padded hidden channels have scale=0, bias=0 -> stay exactly 0 after ReLU.
    return dict(
        w1=pad_cols(w1, hp1).astype(jnp.bfloat16),   # [d_in, hp1]   (d_in unpadded)
        s1=pad_cols(s1, hp1),                        # [1, hp1] f32
        b1=pad_cols(b1f, hp1),                       # [1, hp1] f32
        w2=pad2(w2, hp1, hp2).astype(jnp.bfloat16),  # [hp1, hp2]
        s2=pad_cols(s2, hp2),
        b2=pad_cols(b2f, hp2),
        w3=pad2(w3, hp2, d_out).astype(jnp.bfloat16),  # [hp2, d_out] (d_out unpadded)
        b3=b3,                                         # [1, d_out] f32
    )


# --------------------------------------------------------------------------- #
# Tiling / VMEM budgeting.
# --------------------------------------------------------------------------- #
def _pick_tile_b(batch):
    max_tile = 512                       # safe on v7x (64 MiB VMEM per TC)
    try:
        cap = pltpu.get_tpu_info().vmem_capacity_bytes
        if cap >= (100 << 20):           # v5e / v6e: 128 MiB -> larger tiles amortize
            max_tile = 1024              # per-grid-step overhead (do NOT carry to v7x)
    except Exception:
        pass
    if batch >= 2 * max_tile:
        return max_tile
    # Guarantee >= 2 batch tiles so ("parallel",) can shard over both v7x TCs.
    return max(16, min(max_tile, _round_up(pl.cdiv(batch, 2), 16)))


def _vmem_budget_bytes(tile_b, d_in, hp1, hp2, d_out):
    w_bytes = (d_in * hp1 + hp1 * hp2 + hp2 * d_out) * 2         # bf16 weights (1 buf)
    vec_bytes = (2 * hp1 + 2 * hp2 + d_out) * 4                  # scales + biases
    io_bytes = 2 * tile_b * (d_in + d_out) * 4                   # double-buffered x/out
    interm = 2 * tile_b * (hp1 + hp2) * 4                        # f32 intermediates
    est = w_bytes + vec_bytes + io_bytes + interm
    return int(min(max(2 * est, 32 << 20), 64 << 20))


# --------------------------------------------------------------------------- #
# Forward pass (serving path): only the pallas_call, no weight re-packing.
# --------------------------------------------------------------------------- #
def improved_nn_forward(x, packed, *, min_pallas_batch=128):
    """ImprovedNN forward (eval mode). x: [B, input_size] f32 -> [B, output_size] f32."""
    B, d_in = x.shape
    w1, s1, b1 = packed["w1"], packed["s1"], packed["b1"]
    w2, s2, b2 = packed["w2"], packed["s2"], packed["b2"]
    w3, b3 = packed["w3"], packed["b3"]
    hp1, hp2 = w1.shape[1], w2.shape[1]
    d_out = w3.shape[1]
    assert w1.shape[0] == d_in

    if B < min_pallas_batch:
        # Small batches are dominated by kernel-launch / DMA-setup overhead:
        # run the already-folded weights through plain fused XLA.
        xb = x.astype(jnp.bfloat16)
        h = jnp.maximum(jnp.dot(xb, w1, preferred_element_type=jnp.float32) * s1 + b1, 0.0)
        h = jnp.maximum(
            jnp.dot(h.astype(jnp.bfloat16), w2, preferred_element_type=jnp.float32) * s2 + b2,
            0.0)
        return jnp.dot(h.astype(jnp.bfloat16), w3, preferred_element_type=jnp.float32) + b3

    tile_b = _pick_tile_b(B)
    grid = (pl.cdiv(B, tile_b),)          # ragged last tile handled by Pallas
    vmem_limit = _vmem_budget_bytes(tile_b, d_in, hp1, hp2, d_out)

    def run(single_buffer_weights):
        if single_buffer_weights:
            def resident(shape):
                # Constant block index -> stays in VMEM; single buffer halves
                # the weight VMEM footprint (no re-DMA to overlap anyway).
                return pl.BlockSpec(shape, lambda i: (0, 0),
                                    pipeline_mode=pl.Buffered(buffer_count=1))
        else:
            def resident(shape):
                return pl.BlockSpec(shape, lambda i: (0, 0))

        return pl.pallas_call(
            _mlp_kernel,
            out_shape=jax.ShapeDtypeStruct((B, d_out), jnp.float32),
            grid=grid,
            in_specs=[
                pl.BlockSpec((tile_b, d_in), lambda i: (i, 0)),        # x tile (f32)
                resident(w1.shape), resident(s1.shape), resident(b1.shape),
                resident(w2.shape), resident(s2.shape), resident(b2.shape),
                resident(w3.shape), resident(b3.shape),
            ],
            out_specs=pl.BlockSpec((tile_b, d_out), lambda i: (i, 0)),  # unpadded out
            compiler_params=pltpu.CompilerParams(
                dimension_semantics=("parallel",),
                vmem_limit_bytes=vmem_limit,
            ),
        )(x, w1, s1, b1, w2, s2, b2, w3, b3)

    try:
        return run(single_buffer_weights=True)
    except Exception:
        # Some JAX versions reject Buffered(1); fall back to default buffering.
        return run(single_buffer_weights=False)


# --------------------------------------------------------------------------- #
# Parameter init (mirrors PyTorch shapes; Linear weights stored [in, out]).
# --------------------------------------------------------------------------- #
def init_params(key, input_size, hidden_size, output_size):
    h2 = hidden_size // 2
    ks = jax.random.split(key, 8)

    def uniform_linear(kw, kb, fan_in, fan_out):
        bound = 1.0 / jnp.sqrt(fan_in)
        w = jax.random.uniform(kw, (fan_in, fan_out), jnp.float32, -bound, bound)
        b = jax.random.uniform(kb, (1, fan_out), jnp.float32, -bound, bound)
        return w, b

    w1, b1 = uniform_linear(ks[0], ks[1], input_size, hidden_size)
    w2, b2 = uniform_linear(ks[2], ks[3], hidden_size, h2)
    w3, b3 = uniform_linear(ks[4], ks[5], h2, output_size)

    def bn_params(k, n):
        ka, kb_ = jax.random.split(k)
        g = 1.0 + 0.1 * jax.random.normal(ka, (1, n), jnp.float32)
        beta = 0.1 * jax.random.normal(kb_, (1, n), jnp.float32)
        mu = jnp.zeros((1, n), jnp.float32)
        var = jnp.ones((1, n), jnp.float32)
        return g, beta, mu, var

    g1, beta1, mu1, var1 = bn_params(ks[6], hidden_size)
    g2, beta2, mu2, var2 = bn_params(ks[7], h2)

    return dict(
        w1=w1, b1=b1, g1=g1, beta1=beta1, mu1=mu1, var1=var1,
        w2=w2, b2=b2, g2=g2, beta2=beta2, mu2=mu2, var2=var2,
        w3=w3, b3=b3,
    )


def reference_forward(x, p):
    """Pure-JAX f32 reference (eval-mode semantics) for correctness checking."""
    h = x @ p["w1"] + p["b1"]
    h = (h - p["mu1"]) / jnp.sqrt(p["var1"] + BN_EPS) * p["g1"] + p["beta1"]
    h = jnp.maximum(h, 0.0)
    h = h @ p["w2"] + p["b2"]
    h = (h - p["mu2"]) / jnp.sqrt(p["var2"] + BN_EPS) * p["g2"] + p["beta2"]
    h = jnp.maximum(h, 0.0)
    return h @ p["w3"] + p["b3"]


if __name__ == "__main__":
    key = jax.random.PRNGKey(0)
    k_x, k_p, k_x2 = jax.random.split(key, 3)

    input_size = 32
    hidden_size = 32   # hidden_size // 2 == 16
    output_size = 8

    params = init_params(k_p, input_size, hidden_size, output_size)

    # Fold BN / pad / cast ONCE (hoisted out of the serving path).
    packed = pack_params(params)
    packed = {k: jax.block_until_ready(v) for k, v in packed.items()}

    # Pallas path: batch large enough to produce >= 2 grid tiles.
    batch = 256
    x = jax.random.normal(k_x, (batch, input_size), jnp.float32)
    out = jax.block_until_ready(improved_nn_forward(x, packed))
    ref = reference_forward(x, params)
    assert out.shape == (batch, output_size)
    # bf16 matmul path vs f32 reference: allow a modest tolerance.
    assert jnp.allclose(out, ref, atol=5e-2, rtol=5e-2), "mismatch vs JAX reference (pallas)"

    # Small-batch fallback path (no kernel launch) should match too.
    x_small = jax.random.normal(k_x2, (8, input_size), jnp.float32)
    out_small = jax.block_until_ready(improved_nn_forward(x_small, packed))
    ref_small = reference_forward(x_small, params)
    assert jnp.allclose(out_small, ref_small, atol=5e-2, rtol=5e-2), "mismatch (fallback)"

    print("KERNEL_OK")
</pallas_src>

<mosaic_0001>
module attributes {stable_mosaic.version = 11 : i64} {
  func.func @_mlp_kernel(%arg0: i32, %arg1: memref<128x32xf32, #tpu.memory_space<vmem>>, %arg2: memref<32x128xbf16, #tpu.memory_space<vmem>>, %arg3: memref<1x128xf32, #tpu.memory_space<vmem>>, %arg4: memref<1x128xf32, #tpu.memory_space<vmem>>, %arg5: memref<128x128xbf16, #tpu.memory_space<vmem>>, %arg6: memref<1x128xf32, #tpu.memory_space<vmem>>, %arg7: memref<1x128xf32, #tpu.memory_space<vmem>>, %arg8: memref<128x8xbf16, #tpu.memory_space<vmem>>, %arg9: memref<1x8xf32, #tpu.memory_space<vmem>>, %arg10: memref<128x8xf32, #tpu.memory_space<vmem>>) attributes {dimension_semantics = [#tpu.dimension_semantics<parallel>], iteration_bounds = array<i64: 2>, scalar_prefetch = 0 : i64, scratch_operands = 0 : i64, tpu.core_type = #tpu.core_type<tc>, window_params = [{transform_indices = @transform_0, window_bounds = array<i64: 128, 32>}, {pipeline_mode = #tpu.pipeline_mode<synchronous>, transform_indices = @transform_1, window_bounds = array<i64: 32, 128>}, {pipeline_mode = #tpu.pipeline_mode<synchronous>, transform_indices = @transform_2, window_bounds = array<i64: 1, 128>}, {pipeline_mode = #tpu.pipeline_mode<synchronous>, transform_indices = @transform_3, window_bounds = array<i64: 1, 128>}, {pipeline_mode = #tpu.pipeline_mode<synchronous>, transform_indices = @transform_4, window_bounds = array<i64: 128, 128>}, {pipeline_mode = #tpu.pipeline_mode<synchronous>, transform_indices = @transform_5, window_bounds = array<i64: 1, 128>}, {pipeline_mode = #tpu.pipeline_mode<synchronous>, transform_indices = @transform_6, window_bounds = array<i64: 1, 128>}, {pipeline_mode = #tpu.pipeline_mode<synchronous>, transform_indices = @transform_7, window_bounds = array<i64: 128, 8>}, {pipeline_mode = #tpu.pipeline_mode<synchronous>, transform_indices = @transform_8, window_bounds = array<i64: 1, 8>}, {transform_indices = @transform_9, window_bounds = array<i64: 128, 8>}]} {
    %c0 = arith.constant 0 : index
    %c0_0 = arith.constant 0 : index
    %0 = vector.load %arg1[%c0, %c0_0] : memref<128x32xf32, #tpu.memory_space<vmem>>, vector<128x32xf32>
    %1 = arith.truncf %0 : vector<128x32xf32> to vector<128x32xbf16>
    %c0_1 = arith.constant 0 : index
    %c0_2 = arith.constant 0 : index
    %2 = vector.load %arg2[%c0_1, %c0_2] : memref<32x128xbf16, #tpu.memory_space<vmem>>, vector<32x128xbf16>
    %cst = arith.constant dense<0.000000e+00> : vector<128x128xf32>
    %3 = tpu.matmul %1, %2, %cst {dimension_numbers = #tpu.dot_dimension_numbers<[1], [0], [0], [1], [0, 0, 1, 1], [], []>} : vector<128x32xbf16>, vector<32x128xbf16>, vector<128x128xf32> -> vector<128x128xf32>
    %c0_3 = arith.constant 0 : index
    %c0_4 = arith.constant 0 : index
    %4 = vector.load %arg3[%c0_3, %c0_4] : memref<1x128xf32, #tpu.memory_space<vmem>>, vector<1x128xf32>
    %5 = vector.broadcast %4 : vector<1x128xf32> to vector<128x128xf32>
    %6 = arith.mulf %3, %5 : vector<128x128xf32>
    %c0_5 = arith.constant 0 : index
    %c0_6 = arith.constant 0 : index
    %7 = vector.load %arg4[%c0_5, %c0_6] : memref<1x128xf32, #tpu.memory_space<vmem>>, vector<1x128xf32>
    %8 = vector.broadcast %7 : vector<1x128xf32> to vector<128x128xf32>
    %9 = arith.addf %6, %8 : vector<128x128xf32>
    %cst_7 = arith.constant 0.000000e+00 : f32
    %10 = vector.broadcast %cst_7 : f32 to vector<128x128xf32>
    %11 = arith.maximumf %9, %10 : vector<128x128xf32>
    %12 = arith.truncf %11 : vector<128x128xf32> to vector<128x128xbf16>
    %c0_8 = arith.constant 0 : index
    %c0_9 = arith.constant 0 : index
    %13 = vector.load %arg5[%c0_8, %c0_9] : memref<128x128xbf16, #tpu.memory_space<vmem>>, vector<128x128xbf16>
    %cst_10 = arith.constant dense<0.000000e+00> : vector<128x128xf32>
    %14 = tpu.matmul %12, %13, %cst_10 {dimension_numbers = #tpu.dot_dimension_numbers<[1], [0], [0], [1], [0, 0, 1, 1], [], []>} : vector<128x128xbf16>, vector<128x128xbf16>, vector<128x128xf32> -> vector<128x128xf32>
    %c0_11 = arith.constant 0 : index
    %c0_12 = arith.constant 0 : index
    %15 = vector.load %arg6[%c0_11, %c0_12] : memref<1x128xf32, #tpu.memory_space<vmem>>, vector<1x128xf32>
    %16 = vector.broadcast %15 : vector<1x128xf32> to vector<128x128xf32>
    %17 = arith.mulf %14, %16 : vector<128x128xf32>
    %c0_13 = arith.constant 0 : index
    %c0_14 = arith.constant 0 : index
    %18 = vector.load %arg7[%c0_13, %c0_14] : memref<1x128xf32, #tpu.memory_space<vmem>>, vector<1x128xf32>
    %19 = vector.broadcast %18 : vector<1x128xf32> to vector<128x128xf32>
    %20 = arith.addf %17, %19 : vector<128x128xf32>
    %cst_15 = arith.constant 0.000000e+00 : f32
    %21 = vector.broadcast %cst_15 : f32 to vector<128x128xf32>
    %22 = arith.maximumf %20, %21 : vector<128x128xf32>
    %23 = arith.truncf %22 : vector<128x128xf32> to vector<128x128xbf16>
    %c0_16 = arith.constant 0 : index
    %c0_17 = arith.constant 0 : index
    %24 = vector.load %arg8[%c0_16, %c0_17] : memref<128x8xbf16, #tpu.memory_space<vmem>>, vector<128x8xbf16>
    %cst_18 = arith.constant dense<0.000000e+00> : vector<128x8xf32>
    %25 = tpu.matmul %23, %24, %cst_18 {dimension_numbers = #tpu.dot_dimension_numbers<[1], [0], [0], [1], [0, 0, 1, 1], [], []>} : vector<128x128xbf16>, vector<128x8xbf16>, vector<128x8xf32> -> vector<128x8xf32>
    %c0_19 = arith.constant 0 : index
    %c0_20 = arith.constant 0 : index
    %26 = vector.load %arg9[%c0_19, %c0_20] : memref<1x8xf32, #tpu.memory_space<vmem>>, vector<1x8xf32>
    %27 = vector.broadcast %26 : vector<1x8xf32> to vector<128x8xf32>
    %28 = arith.addf %25, %27 : vector<128x8xf32>
    %c0_21 = arith.constant 0 : index
    %c0_22 = arith.constant 0 : index
    %29 = vector.load %arg10[%c0_21, %c0_22] : memref<128x8xf32, #tpu.memory_space<vmem>>, vector<128x8xf32>
    tpu.vector_store %arg10[%c0_21, %c0_22], %28 {strides = array<i32>} : memref<128x8xf32, #tpu.memory_space<vmem>>, vector<128x8xf32>,
    return
  }
  func.func @transform_0(%arg0: i32) -> (i32, i32) {
    %c0_i32 = arith.constant 0 : i32
    %c0_i32_0 = arith.constant 0 : i32
    return %arg0, %c0_i32 : i32, i32
  }
  func.func @transform_1(%arg0: i32) -> (i32, i32) {
    %c0_i32 = arith.constant 0 : i32
    %c0_i32_0 = arith.constant 0 : i32
    %c0_i32_1 = arith.constant 0 : i32
    return %c0_i32, %c0_i32_0 : i32, i32
  }
  func.func @transform_2(%arg0: i32) -> (i32, i32) {
    %c0_i32 = arith.constant 0 : i32
    %c0_i32_0 = arith.constant 0 : i32
    %c0_i32_1 = arith.constant 0 : i32
    return %c0_i32, %c0_i32_0 : i32, i32
  }
  func.func @transform_3(%arg0: i32) -> (i32, i32) {
    %c0_i32 = arith.constant 0 : i32
    %c0_i32_0 = arith.constant 0 : i32
    %c0_i32_1 = arith.constant 0 : i32
    return %c0_i32, %c0_i32_0 : i32, i32
  }
  func.func @transform_4(%arg0: i32) -> (i32, i32) {
    %c0_i32 = arith.constant 0 : i32
    %c0_i32_0 = arith.constant 0 : i32
    %c0_i32_1 = arith.constant 0 : i32
    return %c0_i32, %c0_i32_0 : i32, i32
  }
  func.func @transform_5(%arg0: i32) -> (i32, i32) {
    %c0_i32 = arith.constant 0 : i32
    %c0_i32_0 = arith.constant 0 : i32
    %c0_i32_1 = arith.constant 0 : i32
    return %c0_i32, %c0_i32_0 : i32, i32
  }
  func.func @transform_6(%arg0: i32) -> (i32, i32) {
    %c0_i32 = arith.constant 0 : i32
    %c0_i32_0 = arith.constant 0 : i32
    %c0_i32_1 = arith.constant 0 : i32
    return %c0_i32, %c0_i32_0 : i32, i32
  }
  func.func @transform_7(%arg0: i32) -> (i32, i32) {
    %c0_i32 = arith.constant 0 : i32
    %c0_i32_0 = arith.constant 0 : i32
    %c0_i32_1 = arith.constant 0 : i32
    return %c0_i32, %c0_i32_0 : i32, i32
  }
  func.func @transform_8(%arg0: i32) -> (i32, i32) {
    %c0_i32 = arith.constant 0 : i32
    %c0_i32_0 = arith.constant 0 : i32
    %c0_i32_1 = arith.constant 0 : i32
    return %c0_i32, %c0_i32_0 : i32, i32
  }
  func.func @transform_9(%arg0: i32) -> (i32, i32) {
    %c0_i32 = arith.constant 0 : i32
    %c0_i32_0 = arith.constant 0 : i32
    return %arg0, %c0_i32 : i32, i32
  }
}

module attributes {stable_mosaic.version = 11 : i64} {
  func.func @_mlp_kernel(%arg0: i32, %arg1: memref<128x32xf32, #tpu.memory_space<vmem>>, %arg2: memref<32x128xbf16, #tpu.memory_space<vmem>>, %arg3: memref<1x128xf32, #tpu.memory_space<vmem>>, %arg4: memref<1x128xf32, #tpu.memory_space<vmem>>, %arg5: memref<128x128xbf16, #tpu.memory_space<vmem>>, %arg6: memref<1x128xf32, #tpu.memory_space<vmem>>, %arg7: memref<1x128xf32, #tpu.memory_space<vmem>>, %arg8: memref<128x8xbf16, #tpu.memory_space<vmem>>, %arg9: memref<1x8xf32, #tpu.memory_space<vmem>>, %arg10: memref<128x8xf32, #tpu.memory_space<vmem>>) attributes {dimension_semantics = [#tpu.dimension_semantics<parallel>], iteration_bounds = array<i64: 2>, scalar_prefetch = 0 : i64, scratch_operands = 0 : i64, tpu.core_type = #tpu.core_type<tc>, window_params = [{transform_indices = @transform_0, window_bounds = array<i64: 128, 32>}, {pipeline_mode = #tpu.pipeline_mode<synchronous>, transform_indices = @transform_1, window_bounds = array<i64: 32, 128>}, {pipeline_mode = #tpu.pipeline_mode<synchronous>, transform_indices = @transform_2, window_bounds = array<i64: 1, 128>}, {pipeline_mode = #tpu.pipeline_mode<synchronous>, transform_indices = @transform_3, window_bounds = array<i64: 1, 128>}, {pipeline_mode = #tpu.pipeline_mode<synchronous>, transform_indices = @transform_4, window_bounds = array<i64: 128, 128>}, {pipeline_mode = #tpu.pipeline_mode<synchronous>, transform_indices = @transform_5, window_bounds = array<i64: 1, 128>}, {pipeline_mode = #tpu.pipeline_mode<synchronous>, transform_indices = @transform_6, window_bounds = array<i64: 1, 128>}, {pipeline_mode = #tpu.pipeline_mode<synchronous>, transform_indices = @transform_7, window_bounds = array<i64: 128, 8>}, {pipeline_mode = #tpu.pipeline_mode<synchronous>, transform_indices = @transform_8, window_bounds = array<i64: 1, 8>}, {transform_indices = @transform_9, window_bounds = array<i64: 128, 8>}]} {
    %c0 = arith.constant 0 : index
    %c0_0 = arith.constant 0 : index
    %0 = vector.load %arg1[%c0, %c0_0] : memref<128x32xf32, #tpu.memory_space<vmem>>, vector<128x32xf32>
    %1 = arith.truncf %0 : vector<128x32xf32> to vector<128x32xbf16>
    %c0_1 = arith.constant 0 : index
    %c0_2 = arith.constant 0 : index
    %2 = vector.load %arg2[%c0_1, %c0_2] : memref<32x128xbf16, #tpu.memory_space<vmem>>, vector<32x128xbf16>
    %cst = arith.constant dense<0.000000e+00> : vector<128x128xf32>
    %3 = tpu.matmul %1, %2, %cst {dimension_numbers = #tpu.dot_dimension_numbers<[1], [0], [0], [1], [0, 0, 1, 1], [], []>} : vector<128x32xbf16>, vector<32x128xbf16>, vector<128x128xf32> -> vector<128x128xf32>
    %c0_3 = arith.constant 0 : index
    %c0_4 = arith.constant 0 : index
    %4 = vector.load %arg3[%c0_3, %c0_4] : memref<1x128xf32, #tpu.memory_space<vmem>>, vector<1x128xf32>
    %5 = vector.broadcast %4 : vector<1x128xf32> to vector<128x128xf32>
    %6 = arith.mulf %3, %5 : vector<128x128xf32>
    %c0_5 = arith.constant 0 : index
    %c0_6 = arith.constant 0 : index
    %7 = vector.load %arg4[%c0_5, %c0_6] : memref<1x128xf32, #tpu.memory_space<vmem>>, vector<1x128xf32>
    %8 = vector.broadcast %7 : vector<1x128xf32> to vector<128x128xf32>
    %9 = arith.addf %6, %8 : vector<128x128xf32>
    %cst_7 = arith.constant 0.000000e+00 : f32
    %10 = vector.broadcast %cst_7 : f32 to vector<128x128xf32>
    %11 = arith.maximumf %9, %10 : vector<128x128xf32>
    %12 = arith.truncf %11 : vector<128x128xf32> to vector<128x128xbf16>
    %c0_8 = arith.constant 0 : index
    %c0_9 = arith.constant 0 : index
    %13 = vector.load %arg5[%c0_8, %c0_9] : memref<128x128xbf16, #tpu.memory_space<vmem>>, vector<128x128xbf16>
    %cst_10 = arith.constant dense<0.000000e+00> : vector<128x128xf32>
    %14 = tpu.matmul %12, %13, %cst_10 {dimension_numbers = #tpu.dot_dimension_numbers<[1], [0], [0], [1], [0, 0, 1, 1], [], []>} : vector<128x128xbf16>, vector<128x128xbf16>, vector<128x128xf32> -> vector<128x128xf32>
    %c0_11 = arith.constant 0 : index
    %c0_12 = arith.constant 0 : index
    %15 = vector.load %arg6[%c0_11, %c0_12] : memref<1x128xf32, #tpu.memory_space<vmem>>, vector<1x128xf32>
    %16 = vector.broadcast %15 : vector<1x128xf32> to vector<128x128xf32>
    %17 = arith.mulf %14, %16 : vector<128x128xf32>
    %c0_13 = arith.constant 0 : index
    %c0_14 = arith.constant 0 : index
    %18 = vector.load %arg7[%c0_13, %c0_14] : memref<1x128xf32, #tpu.memory_space<vmem>>, vector<1x128xf32>
    %19 = vector.broadcast %18 : vector<1x128xf32> to vector<128x128xf32>
    %20 = arith.addf %17, %19 : vector<128x128xf32>
    %cst_15 = arith.constant 0.000000e+00 : f32
    %21 = vector.broadcast %cst_15 : f32 to vector<128x128xf32>
    %22 = arith.maximumf %20, %21 : vector<128x128xf32>
    %23 = arith.truncf %22 : vector<128x128xf32> to vector<128x128xbf16>
    %c0_16 = arith.constant 0 : index
    %c0_17 = arith.constant 0 : index
    %24 = vector.load %arg8[%c0_16, %c0_17] : memref<128x8xbf16, #tpu.memory_space<vmem>>, vector<128x8xbf16>
    %cst_18 = arith.constant dense<0.000000e+00> : vector<128x8xf32>
    %25 = tpu.matmul %23, %24, %cst_18 {dimension_numbers = #tpu.dot_dimension_numbers<[1], [0], [0], [1], [0, 0, 1, 1], [], []>} : vector<128x128xbf16>, vector<128x8xbf16>, vector<128x8xf32> -> vector<128x8xf32>
    %c0_19 = arith.constant 0 : index
    %c0_20 = arith.constant 0 : index
    %26 = vector.load %arg9[%c0_19, %c0_20] : memref<1x8xf32, #tpu.memory_space<vmem>>, vector<1x8xf32>
    %27 = vector.broadcast %26 : vector<1x8xf32> to vector<128x8xf32>
    %28 = arith.addf %25, %27 : vector<128x8xf32>
    %c0_21 = arith.constant 0 : index
    %c0_22 = arith.constant 0 : index
    %29 = vector.load %arg10[%c0_21, %c0_22] : memref<128x8xf32, #tpu.memory_space<vmem>>, vector<128x8xf32>
    tpu.vector_store %arg10[%c0_21, %c0_22], %28 {strides = array<i32>} : memref<128x8xf32, #tpu.memory_space<vmem>>, vector<128x8xf32>,
    return
  }
  func.func @transform_0(%arg0: i32) -> (i32, i32) {
    %c0_i32 = arith.constant 0 : i32
    %c0_i32_0 = arith.constant 0 : i32
    return %arg0, %c0_i32 : i32, i32
  }
  func.func @transform_1(%arg0: i32) -> (i32, i32) {
    %c0_i32 = arith.constant 0 : i32
    %c0_i32_0 = arith.constant 0 : i32
    %c0_i32_1 = arith.constant 0 : i32
    return %c0_i32, %c0_i32_0 : i32, i32
  }
  func.func @transform_2(%arg0: i32) -> (i32, i32) {
    %c0_i32 = arith.constant 0 : i32
    %c0_i32_0 = arith.constant 0 : i32
    %c0_i32_1 = arith.constant 0 : i32
    return %c0_i32, %c0_i32_0 : i32, i32
  }
  func.func @transform_3(%arg0: i32) -> (i32, i32) {
    %c0_i32 = arith.constant 0 : i32
    %c0_i32_0 = arith.constant 0 : i32
    %c0_i32_1 = arith.constant 0 : i32
    return %c0_i32, %c0_i32_0 : i32, i32
  }
  func.func @transform_4(%arg0: i32) -> (i32, i32) {
    %c0_i32 = arith.constant 0 : i32
    %c0_i32_0 = arith.constant 0 : i32
    %c0_i32_1 = arith.constant 0 : i32
    return %c0_i32, %c0_i32_0 : i32, i32
  }
  func.func @transform_5(%arg0: i32) -> (i32, i32) {
    %c0_i32 = arith.constant 0 : i32
    %c0_i32_0 = arith.constant 0 : i32
    %c0_i32_1 = arith.constant 0 : i32
    return %c0_i32, %c0_i32_0 : i32, i32
  }
  func.func @transform_6(%arg0: i32) -> (i32, i32) {
    %c0_i32 = arith.constant 0 : i32
    %c0_i32_0 = arith.constant 0 : i32
    %c0_i32_1 = arith.constant 0 : i32
    return %c0_i32, %c0_i32_0 : i32, i32
  }
  func.func @transform_7(%arg0: i32) -> (i32, i32) {
    %c0_i32 = arith.constant 0 : i32
    %c0_i32_0 = arith.constant 0 : i32
    %c0_i32_1 = arith.constant 0 : i32
    return %c0_i32, %c0_i32_0 : i32, i32
  }
  func.func @transform_8(%arg0: i32) -> (i32, i32) {
    %c0_i32 = arith.constant 0 : i32
    %c0_i32_0 = arith.constant 0 : i32
    %c0_i32_1 = arith.constant 0 : i32
    return %c0_i32, %c0_i32_0 : i32, i32
  }
  func.func @transform_9(%arg0: i32) -> (i32, i32) {
    %c0_i32 = arith.constant 0 : i32
    %c0_i32_0 = arith.constant 0 : i32
    return %arg0, %c0_i32 : i32, i32
  }
}

</mosaic_0001>

<llo_original>
// kernel: tpu_custom_call.1
$region0: #{tpu_custom_call.1}
  #allocation0 [shape = 'u32[]', space=smem, size = 0x4, offset = 0x4, fixed_abs, tag = 'smem constant byte address 0x4 - core index']
  #allocation1 [shape = 'u32[144,128]{1,0:T(1,128)}', space=vmem, size = 0x12000, scoped, tag = 'internal scratch']
  %s0 = inlined_call_operand.vmem [shape: f32[256,32], index: 0, kind: input, shape index: {}]
  %s1 = inlined_call_operand.vmem [shape: bf16[32,128], index: 1, kind: input, shape index: {}]
  %s2 = inlined_call_operand.vmem [shape: f32[1,128], index: 2, kind: input, shape index: {}]
  %s3 = inlined_call_operand.vmem [shape: f32[1,128], index: 3, kind: input, shape index: {}]
  %s4 = inlined_call_operand.vmem [shape: bf16[128,128], index: 4, kind: input, shape index: {}]
  %s5 = inlined_call_operand.vmem [shape: f32[1,128], index: 5, kind: input, shape index: {}]
  %s6 = inlined_call_operand.vmem [shape: f32[1,128], index: 6, kind: input, shape index: {}]
  %s7 = inlined_call_operand.vmem [shape: bf16[128,8], index: 7, kind: input, shape index: {}]
  %s8 = inlined_call_operand.vmem [shape: f32[1,8], index: 8, kind: input, shape index: {}]
  %s9 = inlined_call_operand.vmem [shape: f32[256,8], index: 9, kind: output, shape index: {}]
  %s10 = sld [smem:[#allocation0]]
  $region69: #{tpu_custom_call.1} parent=0
    _
  %s12 = ssub.s32 1, %s10
  %s13 = scalar_select 0, %s12, %s10
  loop: start=0, step=1, limit=4
  $region2: #{tpu_custom_call.1} parent=0 // loop_pre_header
    _
  $region3: #{tpu_custom_call.1} parent=0 // loop_header
    %s15 = sphi 0, %s19
    %p16 = scmp.ge.s32.totalorder %s15, 4
    %s25 = sphi 0, %s27
    %s28 = sphi 0, %s25
    %s29 = sphi 0, %s28
    %s45 = sphi 0, %s29
    %s49 = sphi 0, %s49
    %s51 = sphi 0, %s49
    %s52 = sphi 0, %s51
    %s66 = sphi 0, %s52
    %s70 = sphi 0, %s70
    %s72 = sphi 0, %s70
    %s73 = sphi 0, %s72
    %s87 = sphi 0, %s73
    %s91 = sphi 0, %s91
    %s93 = sphi 0, %s91
    %s94 = sphi 0, %s93
    %s108 = sphi 0, %s94
    %s112 = sphi 0, %s112
    %s114 = sphi 0, %s112
    %s115 = sphi 0, %s114
    %s129 = sphi 0, %s115
    %s133 = sphi 0, %s133
    %s135 = sphi 0, %s133
    %s136 = sphi 0, %s135
    %s150 = sphi 0, %s136
    %s154 = sphi 0, %s154
    %s156 = sphi 0, %s154
    %s157 = sphi 0, %s156
    %s171 = sphi 0, %s157
    %s175 = sphi 0, %s175
    %s177 = sphi 0, %s175
    %s178 = sphi 0, %s177
    %s192 = sphi 0, %s178
    %s196 = sphi 0, %s196
    %s198 = sphi 0, %s196
    %s199 = sphi 0, %s198
    %s213 = sphi 0, %s199
    %s219 = sphi 0, %s221
    %s222 = sphi 0, %s219
    %s223 = sphi 0, %s222
    %s239 = sphi 0, %s223
  $region4: #{tpu_custom_call.1} parent=0 // loop_header_branch
    %18 = sbr.rel (%p16) target = $region8
  $region5: #{tpu_custom_call.1} parent=0 // loop_body
    %s20 = ssub.s32 %s15, 1
    %s21 = ssub.s32 %s15, 2
    %s22 = sadd.s32 %s15, 1
    %s23 = ssub.s32 %s15, %s22
    %p24 = scmp.eq.s32.totalorder %s23, 0
    %s26 = sadd.s32 %s25, 1
    %s27 = scalar_select %p24, %s25, %s26
    %p30 = pneg %p24
    %p31 = scmp.eq.s32.totalorder %s15, 1
    %p32 = por %p30, %p31
    %p33 = scmp.ne.s32.totalorder %s25, %s28
    %p34 = scmp.eq.s32.totalorder %s15, 0
    %p35 = por %p33, %p34
    %p36 = scmp.ne.s32.totalorder %s25, %s28
    %p37 = scmp.eq.s32.totalorder %s20, 1
    %p38 = por %p36, %p37
    %p39 = scmp.ne.s32.totalorder %s28, %s29
    %p40 = scmp.eq.s32.totalorder %s20, 0
    %p41 = por %p39, %p40
    %p42 = scmp.ne.s32.totalorder %s28, %s29
    %p43 = scmp.eq.s32.totalorder %s21, 1
    %p44 = por %p42, %p43
    %p46 = scmp.ne.s32.totalorder %s29, %s45
    %p47 = scmp.eq.s32.totalorder %s21, 0
    %p48 = por %p46, %p47
    %s50 = sadd.s32 %s49, 1
    %p53 = scmp.eq.s32.totalorder %s15, 1
    %p54 = scmp.ne.s32.totalorder %s49, %s51
    %p55 = scmp.eq.s32.totalorder %s15, 0
    %p56 = por %p54, %p55
    %p57 = scmp.ne.s32.totalorder %s49, %s51
    %p58 = scmp.eq.s32.totalorder %s20, 1
    %p59 = por %p57, %p58
    %p60 = scmp.ne.s32.totalorder %s51, %s52
    %p61 = scmp.eq.s32.totalorder %s20, 0
    %p62 = por %p60, %p61
    %p63 = scmp.ne.s32.totalorder %s51, %s52
    %p64 = scmp.eq.s32.totalorder %s21, 1
    %p65 = por %p63, %p64
    %p67 = scmp.ne.s32.totalorder %s52, %s66
    %p68 = scmp.eq.s32.totalorder %s21, 0
    %p69 = por %p67, %p68
    %s71 = sadd.s32 %s70, 1
    %p74 = scmp.eq.s32.totalorder %s15, 1
    %p75 = scmp.ne.s32.totalorder %s70, %s72
    %p76 = scmp.eq.s32.totalorder %s15, 0
    %p77 = por %p75, %p76
    %p78 = scmp.ne.s32.totalorder %s70, %s72
    %p79 = scmp.eq.s32.totalorder %s20, 1
    %p80 = por %p78, %p79
    %p81 = scmp.ne.s32.totalorder %s72, %s73
    %p82 = scmp.eq.s32.totalorder %s20, 0
    %p83 = por %p81, %p82
    %p84 = scmp.ne.s32.totalorder %s72, %s73
    %p85 = scmp.eq.s32.totalorder %s21, 1
    %p86 = por %p84, %p85
    %p88 = scmp.ne.s32.totalorder %s73, %s87
    %p89 = scmp.eq.s32.totalorder %s21, 0
    %p90 = por %p88, %p89
    %s92 = sadd.s32 %s91, 1
    %p95 = scmp.eq.s32.totalorder %s15, 1
    %p96 = scmp.ne.s32.totalorder %s91, %s93
    %p97 = scmp.eq.s32.totalorder %s15, 0
    %p98 = por %p96, %p97
    %p99 = scmp.ne.s32.totalorder %s91, %s93
    %p100 = scmp.eq.s32.totalorder %s20, 1
    %p101 = por %p99, %p100
    %p102 = scmp.ne.s32.totalorder %s93, %s94
    %p103 = scmp.eq.s32.totalorder %s20, 0
    %p104 = por %p102, %p103
    %p105 = scmp.ne.s32.totalorder %s93, %s94
    %p106 = scmp.eq.s32.totalorder %s21, 1
    %p107 = por %p105, %p106
    %p109 = scmp.ne.s32.totalorder %s94, %s108
    %p110 = scmp.eq.s32.totalorder %s21, 0
    %p111 = por %p109, %p110
    %s113 = sadd.s32 %s112, 1
    %p116 = scmp.eq.s32.totalorder %s15, 1
    %p117 = scmp.ne.s32.totalorder %s112, %s114
    %p118 = scmp.eq.s32.totalorder %s15, 0
    %p119 = por %p117, %p118
    %p120 = scmp.ne.s32.totalorder %s112, %s114
    %p121 = scmp.eq.s32.totalorder %s20, 1
    %p122 = por %p120, %p121
    %p123 = scmp.ne.s32.totalorder %s114, %s115
    %p124 = scmp.eq.s32.totalorder %s20, 0
    %p125 = por %p123, %p124
    %p126 = scmp.ne.s32.totalorder %s114, %s115
    %p127 = scmp.eq.s32.totalorder %s21, 1
    %p128 = por %p126, %p127
    %p130 = scmp.ne.s32.totalorder %s115, %s129
    %p131 = scmp.eq.s32.totalorder %s21, 0
    %p132 = por %p130, %p131
    %s134 = sadd.s32 %s133, 1
    %p137 = scmp.eq.s32.totalorder %s15, 1
    %p138 = scmp.ne.s32.totalorder %s133, %s135
    %p139 = scmp.eq.s32.totalorder %s15, 0
    %p140 = por %p138, %p139
    %p141 = scmp.ne.s32.totalorder %s133, %s135
    %p142 = scmp.eq.s32.totalorder %s20, 1
    %p143 = por %p141, %p142
    %p144 = scmp.ne.s32.totalorder %s135, %s136
    %p145 = scmp.eq.s32.totalorder %s20, 0
    %p146 = por %p144, %p145
    %p147 = scmp.ne.s32.totalorder %s135, %s136
    %p148 = scmp.eq.s32.totalorder %s21, 1
    %p149 = por %p147, %p148
    %p151 = scmp.ne.s32.totalorder %s136, %s150
    %p152 = scmp.eq.s32.totalorder %s21, 0
    %p153 = por %p151, %p152
    %s155 = sadd.s32 %s154, 1
    %p158 = scmp.eq.s32.totalorder %s15, 1
    %p159 = scmp.ne.s32.totalorder %s154, %s156
    %p160 = scmp.eq.s32.totalorder %s15, 0
    %p161 = por %p159, %p160
    %p162 = scmp.ne.s32.totalorder %s154, %s156
    %p163 = scmp.eq.s32.totalorder %s20, 1
    %p164 = por %p162, %p163
    %p165 = scmp.ne.s32.totalorder %s156, %s157
    %p166 = scmp.eq.s32.totalorder %s20, 0
    %p167 = por %p165, %p166
    %p168 = scmp.ne.s32.totalorder %s156, %s157
    %p169 = scmp.eq.s32.totalorder %s21, 1
    %p170 = por %p168, %p169
    %p172 = scmp.ne.s32.totalorder %s157, %s171
    %p173 = scmp.eq.s32.totalorder %s21, 0
    %p174 = por %p172, %p173
    %s176 = sadd.s32 %s175, 1
    %p179 = scmp.eq.s32.totalorder %s15, 1
    %p180 = scmp.ne.s32.totalorder %s175, %s177
    %p181 = scmp.eq.s32.totalorder %s15, 0
    %p182 = por %p180, %p181
    %p183 = scmp.ne.s32.totalorder %s175, %s177
    %p184 = scmp.eq.s32.totalorder %s20, 1
    %p185 = por %p183, %p184
    %p186 = scmp.ne.s32.totalorder %s177, %s178
    %p187 = scmp.eq.s32.totalorder %s20, 0
    %p188 = por %p186, %p187
    %p189 = scmp.ne.s32.totalorder %s177, %s178
    %p190 = scmp.eq.s32.totalorder %s21, 1
    %p191 = por %p189, %p190
    %p193 = scmp.ne.s32.totalorder %s178, %s192
    %p194 = scmp.eq.s32.totalorder %s21, 0
    %p195 = por %p193, %p194
    %s197 = sadd.s32 %s196, 1
    %p200 = scmp.eq.s32.totalorder %s15, 1
    %p201 = scmp.ne.s32.totalorder %s196, %s198
    %p202 = scmp.eq.s32.totalorder %s15, 0
    %p203 = por %p201, %p202
    %p204 = scmp.ne.s32.totalorder %s196, %s198
    %p205 = scmp.eq.s32.totalorder %s20, 1
    %p206 = por %p204, %p205
    %p207 = scmp.ne.s32.totalorder %s198, %s199
    %p208 = scmp.eq.s32.totalorder %s20, 0
    %p209 = por %p207, %p208
    %p210 = scmp.ne.s32.totalorder %s198, %s199
    %p211 = scmp.eq.s32.totalorder %s21, 1
    %p212 = por %p210, %p211
    %p214 = scmp.ne.s32.totalorder %s199, %s213
    %p215 = scmp.eq.s32.totalorder %s21, 0
    %p216 = por %p214, %p215
    %s217 = ssub.s32 %s15, %s22
    %p218 = scmp.eq.s32.totalorder %s217, 0
    %s220 = sadd.s32 %s219, 1
    %s221 = scalar_select %p218, %s219, %s220
    %p224 = pneg %p218
    %p225 = scmp.eq.s32.totalorder %s15, 1
    %p226 = por %p224, %p225
    %p227 = scmp.ne.s32.totalorder %s219, %s222
    %p228 = scmp.eq.s32.totalorder %s15, 0
    %p229 = por %p227, %p228
    %p230 = scmp.ne.s32.totalorder %s219, %s222
    %p231 = scmp.eq.s32.totalorder %s20, 1
    %p232 = por %p230, %p231
    %p233 = scmp.ne.s32.totalorder %s222, %s223
    %p234 = scmp.eq.s32.totalorder %s20, 0
    %p235 = por %p233, %p234
    %p236 = scmp.ne.s32.totalorder %s222, %s223
    %p237 = scmp.eq.s32.totalorder %s21, 1
    %p238 = por %p236, %p237
    %p240 = scmp.ne.s32.totalorder %s223, %s239
    %p241 = scmp.eq.s32.totalorder %s21, 0
    %p242 = por %p240, %p241
    %p243 = scmp.le.s32.totalorder 1, %s15
    %p244 = scmp.lt.s32.totalorder %s15, 3
    %p245 = pnand %p243, %p244
    %p246 = pneg %p245
    // Predicated region
    $region9: #{tpu_custom_call.1} parent=5 // pred_check
      _
    $region10: #{tpu_custom_call.1} parent=5 // pred_check_branch
      %248 = sbr.rel (%p245) target = $region12
    $region11: #{tpu_custom_call.1} parent=5 // pred_region
      %s249 = ssub.s32 %s15, 1
      // Predicated region
      $region13: #{tpu_custom_call.1} parent=11 // pred_check
        %p250 = pneg %p62
      $region14: #{tpu_custom_call.1} parent=11 // pred_check_branch
        %252 = sbr.rel (%p250) target = $region16
      $region15: #{tpu_custom_call.1} parent=11 // pred_region
        _
      $region16: #{tpu_custom_call.1} parent=11 // pred_fallthru
        _
      // Predicated region
      $region17: #{tpu_custom_call.1} parent=11 // pred_check
        %p253 = pneg %p83
      $region18: #{tpu_custom_call.1} parent=11 // pred_check_branch
        %255 = sbr.rel (%p253) target = $region20
      $region19: #{tpu_custom_call.1} parent=11 // pred_region
        _
      $region20: #{tpu_custom_call.1} parent=11 // pred_fallthru
        _
      // Predicated region
      $region21: #{tpu_custom_call.1} parent=11 // pred_check
        %p256 = pneg %p104
      $region22: #{tpu_custom_call.1} parent=11 // pred_check_branch
        %258 = sbr.rel (%p256) target = $region24
      $region23: #{tpu_custom_call.1} parent=11 // pred_region
        _
      $region24: #{tpu_custom_call.1} parent=11 // pred_fallthru
        _
      // Predicated region
      $region25: #{tpu_custom_call.1} parent=11 // pred_check
        %p259 = pneg %p125
      $region26: #{tpu_custom_call.1} parent=11 // pred_check_branch
        %261 = sbr.rel (%p259) target = $region28
      $region27: #{tpu_custom_call.1} parent=11 // pred_region
        _
      $region28: #{tpu_custom_call.1} parent=11 // pred_fallthru
        _
      // Predicated region
      $region29: #{tpu_custom_call.1} parent=11 // pred_check
        %p262 = pneg %p146
      $region30: #{tpu_custom_call.1} parent=11 // pred_check_branch
        %264 = sbr.rel (%p262) target = $region32
      $region31: #{tpu_custom_call.1} parent=11 // pred_region
        _
      $region32: #{tpu_custom_call.1} parent=11 // pred_fallthru
        _
      // Predicated region
      $region33: #{tpu_custom_call.1} parent=11 // pred_check
        %p265 = pneg %p167
      $region34: #{tpu_custom_call.1} parent=11 // pred_check_branch
        %267 = sbr.rel (%p265) target = $region36
      $region35: #{tpu_custom_call.1} parent=11 // pred_region
        _
      $region36: #{tpu_custom_call.1} parent=11 // pred_fallthru
        _
      // Predicated region
      $region37: #{tpu_custom_call.1} parent=11 // pred_check
        %p268 = pneg %p188
      $region38: #{tpu_custom_call.1} parent=11 // pred_check_branch
        %270 = sbr.rel (%p268) target = $region40
      $region39: #{tpu_custom_call.1} parent=11 // pred_region
        _
      $region40: #{tpu_custom_call.1} parent=11 // pred_fallthru
        _
      // Predicated region
      $region41: #{tpu_custom_call.1} parent=11 // pred_check
        %p271 = pneg %p209
      $region42: #{tpu_custom_call.1} parent=11 // pred_check_branch
        %273 = sbr.rel (%p271) target = $region44
      $region43: #{tpu_custom_call.1} parent=11 // pred_region
        _
      $region44: #{tpu_custom_call.1} parent=11 // pred_fallthru
        _
    $region12: #{tpu_custom_call.1} parent=5 // pred_fallthru
      _
    %p274 = scmp.lt.s32.totalorder %s15, 2
    // Predicated region
    $region45: #{tpu_custom_call.1} parent=5 // pred_check
      %p275 = pneg %p274
    $region46: #{tpu_custom_call.1} parent=5 // pred_check_branch
      %277 = sbr.rel (%p275) target = $region48
    $region47: #{tpu_custom_call.1} parent=5 // pred_region
      // Predicated region
      $region49: #{tpu_custom_call.1} parent=47 // pred_check
        %p278 = pneg %p35
      $region50: #{tpu_custom_call.1} parent=47 // pred_check_branch
        %280 = sbr.rel (%p278) target = $region52
      $region51: #{tpu_custom_call.1} parent=47 // pred_region
        %s281 = smul.u32 16, %s15
        %p282 = scmp.lt.s32.totalorder %s281, 31
        %s283 = scalar_select %p282, %s281, 31
        %s284 = smul.addr %s283, 8
        %s285 = scalar_lea.vmem %s0, %s284
        %s286 = smul.u32 16, %s15
      $region52: #{tpu_custom_call.1} parent=47 // pred_fallthru
        _
    $region48: #{tpu_custom_call.1} parent=5 // pred_fallthru
      _
    %p287 = scmp.le.s32.totalorder 1, %s15
    %p288 = scmp.lt.s32.totalorder %s15, 3
    %p289 = pnand %p287, %p288
    %p290 = pneg %p289
    // Predicated region
    $region53: #{tpu_custom_call.1} parent=5 // pred_check
      _
    $region54: #{tpu_custom_call.1} parent=5 // pred_check_branch
      %292 = sbr.rel (%p289) target = $region56
    $region55: #{tpu_custom_call.1} parent=5 // pred_region
      %s293 = ssub.s32 %s15, 1
      %s294 = smul.u32 16, %s20
      %p295 = scmp.lt.s32.totalorder %s294, 31
      %s296 = scalar_select %p295, %s294, 31
      %s297 = smul.addr %s296, 8
      %s298 = scalar_lea.vmem %s0, %s297
      %p299 = pneg %p41
      %p300 = pneg %p38
      %p301 = pneg %p62
      %p302 = pneg %p59
      %p303 = pneg %p83
      %p304 = pneg %p80
      %p305 = pneg %p104
      %p306 = pneg %p101
      %p307 = pneg %p125
      %p308 = pneg %p122
      %p309 = pneg %p146
      %p310 = pneg %p143
      %p311 = pneg %p167
      %p312 = pneg %p164
      %p313 = pneg %p188
      %p314 = pneg %p185
      %p315 = pneg %p209
      %p316 = pneg %p206
      %p317 = pneg %p235
      %p318 = pneg %p232
      %s319 = smul.u32 16, %s20
      %p320 = scmp.lt.s32.totalorder %s319, 31
      %s321 = scalar_select %p320, %s319, 31
      %s322 = smul.addr %s321, 8
      %s323 = scalar_lea.vmem %s9, %s322
      %s324 = smul.u32 16, %s20
      %p325 = scmp.lt.s32.totalorder %s324, 31
      %s326 = scalar_select %p325, %s324, 31
      %s327 = smul.addr %s326, 8
      %s328 = scalar_lea.vmem %s0, %s327
      %s329 = smul.u32 16, %s20
      %s330 = smul.u32 16, %s20
      %p331 = scmp.lt.s32.totalorder %s330, 31
      %s332 = scalar_select %p331, %s330, 31
      %s333 = smul.addr %s332, 8
      %s334 = scalar_lea.vmem %s9, %s333
      %s335 = smul.u32 16, %s20
      %v337 = vld [vmem:[%s328] sm:$0xff]
      %v338 = vld [vmem:[%s328 + $0x8] sm:$0xff]
      %v339 = vld [vmem:[%s328 + $0x10] sm:$0xff]
      %v340 = vld [vmem:[%s328 + $0x18] sm:$0xff]
      %v341 = vld [vmem:[%s328 + $0x20] sm:$0xff]
      %v342 = vld [vmem:[%s328 + $0x28] sm:$0xff]
      %v343 = vld [vmem:[%s328 + $0x30] sm:$0xff]
      %v344 = vld [vmem:[%s328 + $0x38] sm:$0xff]
      %v345 = vld [vmem:[%s328 + $0x40] sm:$0xff]
      %v346 = vld [vmem:[%s328 + $0x48] sm:$0xff]
      %v347 = vld [vmem:[%s328 + $0x50] sm:$0xff]
      %v348 = vld [vmem:[%s328 + $0x58] sm:$0xff]
      %v349 = vld [vmem:[%s328 + $0x60] sm:$0xff]
      %v350 = vld [vmem:[%s328 + $0x68] sm:$0xff]
      %v351 = vld [vmem:[%s328 + $0x70] sm:$0xff]
      %v352 = vld [vmem:[%s328 + $0x78] sm:$0xff]
      %v353 = vpack.c.bf16 %v338, %v337
      %v354 = vpack.c.bf16 %v340, %v339
      %v355 = vpack.c.bf16 %v342, %v341
      %v356 = vpack.c.bf16 %v344, %v343
      %v357 = vpack.c.bf16 %v346, %v345
      %v358 = vpack.c.bf16 %v348, %v347
      %v359 = vpack.c.bf16 %v350, %v349
      %v360 = vpack.c.bf16 %v352, %v351
      %v361 = vld [vmem:[%s1] sm:$0xf]
      %v362 = vld [vmem:[%s1 + $0x4] sm:$0xf]
      %v363 = vld [vmem:[%s1 + $0x8] sm:$0xf]
      %v364 = vld [vmem:[%s1 + $0xc] sm:$0xf]
      %v369 = vunpack.c.l.b16 %v361
      %v370 = vunpack.c.l.b16 %v362
      %v371 = vunpack.c.l.b16 %v363
      %v372 = vunpack.c.l.b16 %v364
      %v373 = vpack.c.b16 %v370, %v369
      %v374 = vpack.c.b16 %v372, %v371
      %vm377 = vcmask 261120
      %v379 = vsel %vm377, %v353, 0
      %v382 = vsel %vm377, %v354, 0
      %v385 = vsel %vm377, %v355, 0
      %v388 = vsel %vm377, %v356, 0
      %v391 = vsel %vm377, %v357, 0
      %v394 = vsel %vm377, %v358, 0
      %v397 = vsel %vm377, %v359, 0
      %v400 = vsel %vm377, %v360, 0
      %402 = vmatprep.subr.bf16.mxu0 0
      %403 = vmatpush1.bf16.msra.mxu0 %v373
      %404 = vmatprep.subr.bf16.mxu0 0
      %405 = vmatpush1.bf16.msra.mxu0 %v374
      %406 = vmatprep.subr.bf16.mxu0 0
      %407 = vmatpush1.bf16.msra.mxu0 0
      %408 = vmatprep.subr.bf16.mxu0 0
      %409 = vmatpush1.bf16.msra.mxu0 0
      %410 = vmatprep.subr.bf16.mxu0 0
      %411 = vmatpush1.bf16.msra.mxu0 0
      %412 = vmatprep.subr.bf16.mxu0 0
      %413 = vmatpush1.bf16.msra.mxu0 0
      %414 = vmatprep.subr.bf16.mxu0 0
      %415 = vmatpush1.bf16.msra.mxu0 0
      %416 = vmatprep.subr.bf16.mxu0 0
      %417 = vmatpush1.bf16.msra.mxu0 0
      %418 = vmatprep.subr.bf16.mxu0 0
      %419 = vmatpush1.bf16.msra.mxu0 0
      %420 = vmatprep.subr.bf16.mxu0 0
      %421 = vmatpush1.bf16.msra.mxu0 0
      %422 = vmatprep.subr.bf16.mxu0 0
      %423 = vmatpush1.bf16.msra.mxu0 0
      %424 = vmatprep.subr.bf16.mxu0 0
      %425 = vmatpush1.bf16.msra.mxu0 0
      %426 = vmatprep.subr.bf16.mxu0 0
      %427 = vmatpush1.bf16.msra.mxu0 0
      %428 = vmatprep.subr.bf16.mxu0 0
      %429 = vmatpush1.bf16.msra.mxu0 0
      %430 = vmatprep.subr.bf16.mxu0 0
      %431 = vmatpush1.bf16.msra.mxu0 0
      %432 = vmatprep.subr.bf16.mxu0 0
      %433 = vmatpush1.bf16.msra.mxu0 0
      %434 = vmatprep.mubr.bf16.mxu0 0
      %435 = vmatmul.mubr.bf16.gmra.mrb[0].mxu0 %v379
      %v436 = vpop.f32.mrb[0].mxu0
      %v437 = vadd.f32 0.0, %v436
      %v438 = vpop.f32.mrb[0].mxu0
      %v439 = vpop.f32.mrb[0].mxu0
      %v440 = vadd.f32 0.0, %v439
      %v441 = vpop.f32.mrb[0].mxu0
      %442 = vmatprep.mubr.bf16.mxu0 0
      %443 = vmatmul.mubr.bf16.gmra.mrb[0].mxu0 %v382
      %v444 = vpop.f32.mrb[0].mxu0
      %v445 = vadd.f32 0.0, %v444
      %v446 = vpop.f32.mrb[0].mxu0
      %v447 = vpop.f32.mrb[0].mxu0
      %v448 = vadd.f32 0.0, %v447
      %v449 = vpop.f32.mrb[0].mxu0
      %450 = vmatprep.mubr.bf16.mxu0 0
      %451 = vmatmul.mubr.bf16.gmra.mrb[0].mxu0 %v385
      %v452 = vpop.f32.mrb[0].mxu0
      %v453 = vadd.f32 0.0, %v452
      %v454 = vpop.f32.mrb[0].mxu0
      %v455 = vpop.f32.mrb[0].mxu0
      %v456 = vadd.f32 0.0, %v455
      %v457 = vpop.f32.mrb[0].mxu0
      %458 = vmatprep.mubr.bf16.mxu0 0
      %459 = vmatmul.mubr.bf16.gmra.mrb[0].mxu0 %v388
      %v460 = vpop.f32.mrb[0].mxu0
      %v461 = vadd.f32 0.0, %v460
      %v462 = vpop.f32.mrb[0].mxu0
      %v463 = vpop.f32.mrb[0].mxu0
      %v464 = vadd.f32 0.0, %v463
      %v465 = vpop.f32.mrb[0].mxu0
      %466 = vmatprep.mubr.bf16.mxu0 0
      %467 = vmatmul.mubr.bf16.gmra.mrb[0].mxu0 %v391
      %v468 = vpop.f32.mrb[0].mxu0
      %v469 = vadd.f32 0.0, %v468
      %v470 = vpop.f32.mrb[0].mxu0
      %v471 = vpop.f32.mrb[0].mxu0
      %v472 = vadd.f32 0.0, %v471
      %v473 = vpop.f32.mrb[0].mxu0
      %474 = vmatprep.mubr.bf16.mxu0 0
      %475 = vmatmul.mubr.bf16.gmra.mrb[0].mxu0 %v394
      %v476 = vpop.f32.mrb[0].mxu0
      %v477 = vadd.f32 0.0, %v476
      %v478 = vpop.f32.mrb[0].mxu0
      %v479 = vpop.f32.mrb[0].mxu0
      %v480 = vadd.f32 0.0, %v479
      %v481 = vpop.f32.mrb[0].mxu0
      %482 = vmatprep.mubr.bf16.mxu0 0
      %483 = vmatmul.mubr.bf16.gmra.mrb[0].mxu0 %v397
      %v484 = vpop.f32.mrb[0].mxu0
      %v485 = vadd.f32 0.0, %v484
      %v486 = vpop.f32.mrb[0].mxu0
      %v487 = vpop.f32.mrb[0].mxu0
      %v488 = vadd.f32 0.0, %v487
      %v489 = vpop.f32.mrb[0].mxu0
      %490 = vmatprep.mubr.bf16.mxu0 0
      %491 = vmatmul.mubr.bf16.gmra.mrb[0].mxu0 %v400
      %v492 = vpop.f32.mrb[0].mxu0
      %v493 = vadd.f32 0.0, %v492
      %v494 = vpop.f32.mrb[0].mxu0
      %v495 = vpop.f32.mrb[0].mxu0
      %v496 = vadd.f32 0.0, %v495
      %v497 = vpop.f32.mrb[0].mxu0
      %498 = vdwg.mxu0
      %v499 = vld [vmem:[%s2] sm:$0x1]
      %v501 = vlaneseq
      %v502 = vshrl.u32 %v501, 7
      %v503 = vsub.s32 0, %v502
      %v504 = vrot.slane %v499, %v503
      %v506 = vmul.f32 %v437, %v504
      %v507 = vmul.f32 %v440, %v504
      %v508 = vmul.f32 %v445, %v504
      %v509 = vmul.f32 %v448, %v504
      %v510 = vmul.f32 %v453, %v504
      %v511 = vmul.f32 %v456, %v504
      %v512 = vmul.f32 %v461, %v504
      %v513 = vmul.f32 %v464, %v504
      %v514 = vmul.f32 %v469, %v504
      %v515 = vmul.f32 %v472, %v504
      %v516 = vmul.f32 %v477, %v504
      %v517 = vmul.f32 %v480, %v504
      %v518 = vmul.f32 %v485, %v504
      %v519 = vmul.f32 %v488, %v504
      %v520 = vmul.f32 %v493, %v504
      %v521 = vmul.f32 %v496, %v504
      %v522 = vld [vmem:[%s3] sm:$0x1]
      %v524 = vlaneseq
      %v525 = vshrl.u32 %v524, 7
      %v526 = vsub.s32 0, %v525
      %v527 = vrot.slane %v522, %v526
      %v529 = vadd.f32 %v506, %v527
      %v530 = vadd.f32 %v507, %v527
      %v531 = vadd.f32 %v508, %v527
      %v532 = vadd.f32 %v509, %v527
      %v533 = vadd.f32 %v510, %v527
      %v534 = vadd.f32 %v511, %v527
      %v535 = vadd.f32 %v512, %v527
      %v536 = vadd.f32 %v513, %v527
      %v537 = vadd.f32 %v514, %v527
      %v538 = vadd.f32 %v515, %v527
      %v539 = vadd.f32 %v516, %v527
      %v540 = vadd.f32 %v517, %v527
      %v541 = vadd.f32 %v518, %v527
      %v542 = vadd.f32 %v519, %v527
      %v543 = vadd.f32 %v520, %v527
      %v544 = vadd.f32 %v521, %v527
      %v545 = vmax.f32 %v529, 0.0
      %v546 = vmax.f32 %v530, 0.0
      %v547 = vmax.f32 %v531, 0.0
      %v548 = vmax.f32 %v532, 0.0
      %v549 = vmax.f32 %v533, 0.0
      %v550 = vmax.f32 %v534, 0.0
      %v551 = vmax.f32 %v535, 0.0
      %v552 = vmax.f32 %v536, 0.0
      %v553 = vmax.f32 %v537, 0.0
      %v554 = vmax.f32 %v538, 0.0
      %v555 = vmax.f32 %v539, 0.0
      %v556 = vmax.f32 %v540, 0.0
      %v557 = vmax.f32 %v541, 0.0
      %v558 = vmax.f32 %v542, 0.0
      %v559 = vmax.f32 %v543, 0.0
      %v560 = vmax.f32 %v544, 0.0
      %v561 = vpack.c.bf16 %v546, %v545
      %v562 = vpack.c.bf16 %v548, %v547
      %v563 = vpack.c.bf16 %v550, %v549
      %v564 = vpack.c.bf16 %v552, %v551
      %v565 = vpack.c.bf16 %v554, %v553
      %v566 = vpack.c.bf16 %v556, %v555
      %v567 = vpack.c.bf16 %v558, %v557
      %v568 = vpack.c.bf16 %v560, %v559
      %v569 = vld [vmem:[%s4] sm:$0xf]
      %v570 = vld [vmem:[%s4 + $0x4] sm:$0xf]
      %v571 = vld [vmem:[%s4 + $0x8] sm:$0xf]
      %v572 = vld [vmem:[%s4 + $0xc] sm:$0xf]
      %v573 = vld [vmem:[%s4 + $0x10] sm:$0xf]
      %v574 = vld [vmem:[%s4 + $0x14] sm:$0xf]
      %v575 = vld [vmem:[%s4 + $0x18] sm:$0xf]
      %v576 = vld [vmem:[%s4 + $0x1c] sm:$0xf]
      %v577 = vld [vmem:[%s4 + $0x20] sm:$0xf]
      %v578 = vld [vmem:[%s4 + $0x24] sm:$0xf]
      %v579 = vld [vmem:[%s4 + $0x28] sm:$0xf]
      %v580 = vld [vmem:[%s4 + $0x2c] sm:$0xf]
      %v581 = vld [vmem:[%s4 + $0x30] sm:$0xf]
      %v582 = vld [vmem:[%s4 + $0x34] sm:$0xf]
      %v583 = vld [vmem:[%s4 + $0x38] sm:$0xf]
      %v584 = vld [vmem:[%s4 + $0x3c] sm:$0xf]
      %v601 = vunpack.c.l.b16 %v569
      %v602 = vunpack.c.l.b16 %v570
      %v603 = vunpack.c.l.b16 %v571
      %v604 = vunpack.c.l.b16 %v572
      %v605 = vunpack.c.l.b16 %v573
      %v606 = vunpack.c.l.b16 %v574
      %v607 = vunpack.c.l.b16 %v575
      %v608 = vunpack.c.l.b16 %v576
      %v609 = vunpack.c.l.b16 %v577
      %v610 = vunpack.c.l.b16 %v578
      %v611 = vunpack.c.l.b16 %v579
      %v612 = vunpack.c.l.b16 %v580
      %v613 = vunpack.c.l.b16 %v581
      %v614 = vunpack.c.l.b16 %v582
      %v615 = vunpack.c.l.b16 %v583
      %v616 = vunpack.c.l.b16 %v584
      %v617 = vpack.c.b16 %v602, %v601
      %v618 = vpack.c.b16 %v604, %v603
      %v619 = vpack.c.b16 %v606, %v605
      %v620 = vpack.c.b16 %v608, %v607
      %v621 = vpack.c.b16 %v610, %v609
      %v622 = vpack.c.b16 %v612, %v611
      %v623 = vpack.c.b16 %v614, %v613
      %v624 = vpack.c.b16 %v616, %v615
      %633 = vmatprep.subr.bf16.mxu0 0
      %634 = vmatpush1.bf16.msra.mxu0 %v617
      %635 = vmatprep.subr.bf16.mxu0 0
      %636 = vmatpush1.bf16.msra.mxu0 %v618
      %637 = vmatprep.subr.bf16.mxu0 0
      %638 = vmatpush1.bf16.msra.mxu0 %v619
      %639 = vmatprep.subr.bf16.mxu0 0
      %640 = vmatpush1.bf16.msra.mxu0 %v620
      %641 = vmatprep.subr.bf16.mxu0 0
      %642 = vmatpush1.bf16.msra.mxu0 %v621
      %643 = vmatprep.subr.bf16.mxu0 0
      %644 = vmatpush1.bf16.msra.mxu0 %v622
      %645 = vmatprep.subr.bf16.mxu0 0
      %646 = vmatpush1.bf16.msra.mxu0 %v623
      %647 = vmatprep.subr.bf16.mxu0 0
      %648 = vmatpush1.bf16.msra.mxu0 %v624
      %649 = vmatprep.subr.bf16.mxu0 0
      %650 = vmatpush1.bf16.msra.mxu0 0
      %651 = vmatprep.subr.bf16.mxu0 0
      %652 = vmatpush1.bf16.msra.mxu0 0
      %653 = vmatprep.subr.bf16.mxu0 0
      %654 = vmatpush1.bf16.msra.mxu0 0
      %655 = vmatprep.subr.bf16.mxu0 0
      %656 = vmatpush1.bf16.msra.mxu0 0
      %657 = vmatprep.subr.bf16.mxu0 0
      %658 = vmatpush1.bf16.msra.mxu0 0
      %659 = vmatprep.subr.bf16.mxu0 0
      %660 = vmatpush1.bf16.msra.mxu0 0
      %661 = vmatprep.subr.bf16.mxu0 0
      %662 = vmatpush1.bf16.msra.mxu0 0
      %663 = vmatprep.subr.bf16.mxu0 0
      %664 = vmatpush1.bf16.msra.mxu0 0
      %665 = vmatprep.mubr.bf16.mxu0 0
      %666 = vmatmul.mubr.bf16.gmra.mrb[0].mxu0 %v561
      %v667 = vpop.f32.mrb[0].mxu0
      %v668 = vadd.f32 0.0, %v667
      %v669 = vpop.f32.mrb[0].mxu0
      %v670 = vpop.f32.mrb[0].mxu0
      %v671 = vadd.f32 0.0, %v670
      %v672 = vpop.f32.mrb[0].mxu0
      %673 = vmatprep.mubr.bf16.mxu0 0
      %674 = vmatmul.mubr.bf16.gmra.mrb[0].mxu0 %v562
      %v675 = vpop.f32.mrb[0].mxu0
      %v676 = vadd.f32 0.0, %v675
      %v677 = vpop.f32.mrb[0].mxu0
      %v678 = vpop.f32.mrb[0].mxu0
      %v679 = vadd.f32 0.0, %v678
      %v680 = vpop.f32.mrb[0].mxu0
      %681 = vmatprep.mubr.bf16.mxu0 0
      %682 = vmatmul.mubr.bf16.gmra.mrb[0].mxu0 %v563
      %v683 = vpop.f32.mrb[0].mxu0
      %v684 = vadd.f32 0.0, %v683
      %v685 = vpop.f32.mrb[0].mxu0
      %v686 = vpop.f32.mrb[0].mxu0
      %v687 = vadd.f32 0.0, %v686
      %v688 = vpop.f32.mrb[0].mxu0
      %689 = vmatprep.mubr.bf16.mxu0 0
      %690 = vmatmul.mubr.bf16.gmra.mrb[0].mxu0 %v564
      %v691 = vpop.f32.mrb[0].mxu0
      %v692 = vadd.f32 0.0, %v691
      %v693 = vpop.f32.mrb[0].mxu0
      %v694 = vpop.f32.mrb[0].mxu0
      %v695 = vadd.f32 0.0, %v694
      %v696 = vpop.f32.mrb[0].mxu0
      %697 = vmatprep.mubr.bf16.mxu0 0
      %698 = vmatmul.mubr.bf16.gmra.mrb[0].mxu0 %v565
      %v699 = vpop.f32.mrb[0].mxu0
      %v700 = vadd.f32 0.0, %v699
      %v701 = vpop.f32.mrb[0].mxu0
      %v702 = vpop.f32.mrb[0].mxu0
      %v703 = vadd.f32 0.0, %v702
      %v704 = vpop.f32.mrb[0].mxu0
      %705 = vmatprep.mubr.bf16.mxu0 0
      %706 = vmatmul.mubr.bf16.gmra.mrb[0].mxu0 %v566
      %v707 = vpop.f32.mrb[0].mxu0
      %v708 = vadd.f32 0.0, %v707
      %v709 = vpop.f32.mrb[0].mxu0
      %v710 = vpop.f32.mrb[0].mxu0
      %v711 = vadd.f32 0.0, %v710
      %v712 = vpop.f32.mrb[0].mxu0
      %713 = vmatprep.mubr.bf16.mxu0 0
      %714 = vmatmul.mubr.bf16.gmra.mrb[0].mxu0 %v567
      %v715 = vpop.f32.mrb[0].mxu0
      %v716 = vadd.f32 0.0, %v715
      %v717 = vpop.f32.mrb[0].mxu0
      %v718 = vpop.f32.mrb[0].mxu0
      %v719 = vadd.f32 0.0, %v718
      %v720 = vpop.f32.mrb[0].mxu0
      %721 = vmatprep.mubr.bf16.mxu0 0
      %722 = vmatmul.mubr.bf16.gmra.mrb[0].mxu0 %v568
      %v723 = vpop.f32.mrb[0].mxu0
      %v724 = vadd.f32 0.0, %v723
      %v725 = vpop.f32.mrb[0].mxu0
      %v726 = vpop.f32.mrb[0].mxu0
      %v727 = vadd.f32 0.0, %v726
      %v728 = vpop.f32.mrb[0].mxu0
      %729 = vdwg.mxu0
      %v730 = vld [vmem:[%s5] sm:$0x1]
      %v732 = vlaneseq
      %v733 = vshrl.u32 %v732, 7
      %v734 = vsub.s32 0, %v733
      %v735 = vrot.slane %v730, %v734
      %v737 = vmul.f32 %v668, %v735
      %v738 = vmul.f32 %v671, %v735
      %v739 = vmul.f32 %v676, %v735
      %v740 = vmul.f32 %v679, %v735
      %v741 = vmul.f32 %v684, %v735
      %v742 = vmul.f32 %v687, %v735
      %v743 = vmul.f32 %v692, %v735
      %v744 = vmul.f32 %v695, %v735
      %v745 = vmul.f32 %v700, %v735
      %v746 = vmul.f32 %v703, %v735
      %v747 = vmul.f32 %v708, %v735
      %v748 = vmul.f32 %v711, %v735
      %v749 = vmul.f32 %v716, %v735
      %v750 = vmul.f32 %v719, %v735
      %v751 = vmul.f32 %v724, %v735
      %v752 = vmul.f32 %v727, %v735
      %v753 = vld [vmem:[%s6] sm:$0x1]
      %v755 = vlaneseq
      %v756 = vshrl.u32 %v755, 7
      %v757 = vsub.s32 0, %v756
      %v758 = vrot.slane %v753, %v757
      %v760 = vadd.f32 %v737, %v758
      %v761 = vadd.f32 %v738, %v758
      %v762 = vadd.f32 %v739, %v758
      %v763 = vadd.f32 %v740, %v758
      %v764 = vadd.f32 %v741, %v758
      %v765 = vadd.f32 %v742, %v758
      %v766 = vadd.f32 %v743, %v758
      %v767 = vadd.f32 %v744, %v758
      %v768 = vadd.f32 %v745, %v758
      %v769 = vadd.f32 %v746, %v758
      %v770 = vadd.f32 %v747, %v758
      %v771 = vadd.f32 %v748, %v758
      %v772 = vadd.f32 %v749, %v758
      %v773 = vadd.f32 %v750, %v758
      %v774 = vadd.f32 %v751, %v758
      %v775 = vadd.f32 %v752, %v758
      %v776 = vmax.f32 %v760, 0.0
      %v777 = vmax.f32 %v761, 0.0
      %v778 = vmax.f32 %v762, 0.0
      %v779 = vmax.f32 %v763, 0.0
      %v780 = vmax.f32 %v764, 0.0
      %v781 = vmax.f32 %v765, 0.0
      %v782 = vmax.f32 %v766, 0.0
      %v783 = vmax.f32 %v767, 0.0
      %v784 = vmax.f32 %v768, 0.0
      %v785 = vmax.f32 %v769, 0.0
      %v786 = vmax.f32 %v770, 0.0
      %v787 = vmax.f32 %v771, 0.0
      %v788 = vmax.f32 %v772, 0.0
      %v789 = vmax.f32 %v773, 0.0
      %v790 = vmax.f32 %v774, 0.0
      %v791 = vmax.f32 %v775, 0.0
      %v792 = vpack.c.bf16 %v777, %v776
      %v793 = vpack.c.bf16 %v779, %v778
      %v794 = vpack.c.bf16 %v781, %v780
      %v795 = vpack.c.bf16 %v783, %v782
      %v796 = vpack.c.bf16 %v785, %v784
      %v797 = vpack.c.bf16 %v787, %v786
      %v798 = vpack.c.bf16 %v789, %v788
      %v799 = vpack.c.bf16 %v791, %v790
      %v800 = vld [vmem:[%s7] sm:$0xf]
      %v801 = vld [vmem:[%s7 + $0x4] sm:$0xf]
      %v802 = vld [vmem:[%s7 + $0x8] sm:$0xf]
      %v803 = vld [vmem:[%s7 + $0xc] sm:$0xf]
      %v804 = vld [vmem:[%s7 + $0x10] sm:$0xf]
      %v805 = vld [vmem:[%s7 + $0x14] sm:$0xf]
      %v806 = vld [vmem:[%s7 + $0x18] sm:$0xf]
      %v807 = vld [vmem:[%s7 + $0x1c] sm:$0xf]
      %v808 = vld [vmem:[%s7 + $0x20] sm:$0xf]
      %v809 = vld [vmem:[%s7 + $0x24] sm:$0xf]
      %v810 = vld [vmem:[%s7 + $0x28] sm:$0xf]
      %v811 = vld [vmem:[%s7 + $0x2c] sm:$0xf]
      %v812 = vld [vmem:[%s7 + $0x30] sm:$0xf]
      %v813 = vld [vmem:[%s7 + $0x34] sm:$0xf]
      %v814 = vld [vmem:[%s7 + $0x38] sm:$0xf]
      %v815 = vld [vmem:[%s7 + $0x3c] sm:$0xf]
      %v816 = vld [vmem:[%s8] sm:$0x1]
      %v818 = vlaneseq
      %v819 = vshrl.u32 %v818, 7
      %v820 = vsub.s32 0, %v819
      %v821 = vrot.slane %v816, %v820
      %v839 = vunpack.c.l.b16 %v800
      %v840 = vunpack.c.l.b16 %v801
      %v841 = vunpack.c.l.b16 %v802
      %v842 = vunpack.c.l.b16 %v803
      %v843 = vunpack.c.l.b16 %v804
      %v844 = vunpack.c.l.b16 %v805
      %v845 = vunpack.c.l.b16 %v806
      %v846 = vunpack.c.l.b16 %v807
      %v847 = vunpack.c.l.b16 %v808
      %v848 = vunpack.c.l.b16 %v809
      %v849 = vunpack.c.l.b16 %v810
      %v850 = vunpack.c.l.b16 %v811
      %v851 = vunpack.c.l.b16 %v812
      %v852 = vunpack.c.l.b16 %v813
      %v853 = vunpack.c.l.b16 %v814
      %v854 = vunpack.c.l.b16 %v815
      %v855 = vpack.c.b16 %v840, %v839
      %v856 = vpack.c.b16 %v842, %v841
      %v857 = vpack.c.b16 %v844, %v843
      %v858 = vpack.c.b16 %v846, %v845
      %v859 = vpack.c.b16 %v848, %v847
      %v860 = vpack.c.b16 %v850, %v849
      %v861 = vpack.c.b16 %v852, %v851
      %v862 = vpack.c.b16 %v854, %v853
      %871 = vmatprep.subr.bf16.mxu0 0
      %872 = vmatpush1.bf16.msra.mxu0 %v855
      %873 = vmatprep.subr.bf16.mxu0 0
      %874 = vmatpush1.bf16.msra.mxu0 %v856
      %875 = vmatprep.subr.bf16.mxu0 0
      %876 = vmatpush1.bf16.msra.mxu0 %v857
      %877 = vmatprep.subr.bf16.mxu0 0
      %878 = vmatpush1.bf16.msra.mxu0 %v858
      %879 = vmatprep.subr.bf16.mxu0 0
      %880 = vmatpush1.bf16.msra.mxu0 %v859
      %881 = vmatprep.subr.bf16.mxu0 0
      %882 = vmatpush1.bf16.msra.mxu0 %v860
      %883 = vmatprep.subr.bf16.mxu0 0
      %884 = vmatpush1.bf16.msra.mxu0 %v861
      %885 = vmatprep.subr.bf16.mxu0 0
      %886 = vmatpush1.bf16.msra.mxu0 %v862
      %887 = vmatprep.subr.bf16.mxu0 0
      %888 = vmatpush1.bf16.msra.mxu0 0
      %889 = vmatprep.subr.bf16.mxu0 0
      %890 = vmatpush1.bf16.msra.mxu0 0
      %891 = vmatprep.subr.bf16.mxu0 0
      %892 = vmatpush1.bf16.msra.mxu0 0
      %893 = vmatprep.subr.bf16.mxu0 0
      %894 = vmatpush1.bf16.msra.mxu0 0
      %895 = vmatprep.subr.bf16.mxu0 0
      %896 = vmatpush1.bf16.msra.mxu0 0
      %897 = vmatprep.subr.bf16.mxu0 0
      %898 = vmatpush1.bf16.msra.mxu0 0
      %899 = vmatprep.subr.bf16.mxu0 0
      %900 = vmatpush1.bf16.msra.mxu0 0
      %901 = vmatprep.subr.bf16.mxu0 0
      %902 = vmatpush1.bf16.msra.mxu0 0
      %903 = vmatprep.mubr.bf16.mxu0 0
      %904 = vmatmul.mubr.bf16.gmra.mrb[0].mxu0 %v792
      %v905 = vpop.f32.mrb[0].mxu0
      %v906 = vadd.f32 %v821, %v905
      %v907 = vpop.f32.mrb[0].mxu0
      %v908 = vpop.f32.mrb[0].mxu0
      %v909 = vadd.f32 %v821, %v908
      %v910 = vpop.f32.mrb[0].mxu0
      %911 = vmatprep.mubr.bf16.mxu0 0
      %912 = vmatmul.mubr.bf16.gmra.mrb[0].mxu0 %v793
      %v913 = vpop.f32.mrb[0].mxu0
      %v914 = vadd.f32 %v821, %v913
      %v915 = vpop.f32.mrb[0].mxu0
      %v916 = vpop.f32.mrb[0].mxu0
      %v917 = vadd.f32 %v821, %v916
      %v918 = vpop.f32.mrb[0].mxu0
      %919 = vmatprep.mubr.bf16.mxu0 0
      %920 = vmatmul.mubr.bf16.gmra.mrb[0].mxu0 %v794
      %v921 = vpop.f32.mrb[0].mxu0
      %v922 = vadd.f32 %v821, %v921
      %v923 = vpop.f32.mrb[0].mxu0
      %v924 = vpop.f32.mrb[0].mxu0
      %v925 = vadd.f32 %v821, %v924
      %v926 = vpop.f32.mrb[0].mxu0
      %927 = vmatprep.mubr.bf16.mxu0 0
      %928 = vmatmul.mubr.bf16.gmra.mrb[0].mxu0 %v795
      %v929 = vpop.f32.mrb[0].mxu0
      %v930 = vadd.f32 %v821, %v929
      %v931 = vpop.f32.mrb[0].mxu0
      %v932 = vpop.f32.mrb[0].mxu0
      %v933 = vadd.f32 %v821, %v932
      %v934 = vpop.f32.mrb[0].mxu0
      %935 = vmatprep.mubr.bf16.mxu0 0
      %936 = vmatmul.mubr.bf16.gmra.mrb[0].mxu0 %v796
      %v937 = vpop.f32.mrb[0].mxu0
      %v938 = vadd.f32 %v821, %v937
      %v939 = vpop.f32.mrb[0].mxu0
      %v940 = vpop.f32.mrb[0].mxu0
      %v941 = vadd.f32 %v821, %v940
      %v942 = vpop.f32.mrb[0].mxu0
      %943 = vmatprep.mubr.bf16.mxu0 0
      %944 = vmatmul.mubr.bf16.gmra.mrb[0].mxu0 %v797
      %v945 = vpop.f32.mrb[0].mxu0
      %v946 = vadd.f32 %v821, %v945
      %v947 = vpop.f32.mrb[0].mxu0
      %v948 = vpop.f32.mrb[0].mxu0
      %v949 = vadd.f32 %v821, %v948
      %v950 = vpop.f32.mrb[0].mxu0
      %951 = vmatprep.mubr.bf16.mxu0 0
      %952 = vmatmul.mubr.bf16.gmra.mrb[0].mxu0 %v798
      %v953 = vpop.f32.mrb[0].mxu0
      %v954 = vadd.f32 %v821, %v953
      %v955 = vpop.f32.mrb[0].mxu0
      %v956 = vpop.f32.mrb[0].mxu0
      %v957 = vadd.f32 %v821, %v956
      %v958 = vpop.f32.mrb[0].mxu0
      %959 = vmatprep.mubr.bf16.mxu0 0
      %960 = vmatmul.mubr.bf16.gmra.mrb[0].mxu0 %v799
      %v961 = vpop.f32.mrb[0].mxu0
      %v962 = vadd.f32 %v821, %v961
      %v963 = vpop.f32.mrb[0].mxu0
      %v964 = vpop.f32.mrb[0].mxu0
      %v965 = vadd.f32 %v821, %v964
      %v966 = vpop.f32.mrb[0].mxu0
      %967 = vdwg.mxu0
      %vm968 = vcmask 64512
      %969 = vst.msk [vmem:[%s334] sm:$0xff] %vm968, %v906
      %970 = vst.msk [vmem:[%s334 + $0x8] sm:$0xff] %vm968, %v909
      %971 = vst.msk [vmem:[%s334 + $0x10] sm:$0xff] %vm968, %v914
      %972 = vst.msk [vmem:[%s334 + $0x18] sm:$0xff] %vm968, %v917
      %973 = vst.msk [vmem:[%s334 + $0x20] sm:$0xff] %vm968, %v922
      %974 = vst.msk [vmem:[%s334 + $0x28] sm:$0xff] %vm968, %v925
      %975 = vst.msk [vmem:[%s334 + $0x30] sm:$0xff] %vm968, %v930
      %976 = vst.msk [vmem:[%s334 + $0x38] sm:$0xff] %vm968, %v933
      %977 = vst.msk [vmem:[%s334 + $0x40] sm:$0xff] %vm968, %v938
      %978 = vst.msk [vmem:[%s334 + $0x48] sm:$0xff] %vm968, %v941
      %979 = vst.msk [vmem:[%s334 + $0x50] sm:$0xff] %vm968, %v946
      %980 = vst.msk [vmem:[%s334 + $0x58] sm:$0xff] %vm968, %v949
      %981 = vst.msk [vmem:[%s334 + $0x60] sm:$0xff] %vm968, %v954
      %982 = vst.msk [vmem:[%s334 + $0x68] sm:$0xff] %vm968, %v957
      %983 = vst.msk [vmem:[%s334 + $0x70] sm:$0xff] %vm968, %v962
      %984 = vst.msk [vmem:[%s334 + $0x78] sm:$0xff] %vm968, %v965
      %s985 = smul.u32 16, %s20
      %p986 = scmp.lt.s32.totalorder %s985, 31
      %s987 = scalar_select %p986, %s985, 31
      %s988 = smul.addr %s987, 8
      %s989 = scalar_lea.vmem %s9, %s988
      // Predicated region
      $region57: #{tpu_custom_call.1} parent=55 // pred_check
        %p990 = pneg %p232
      $region58: #{tpu_custom_call.1} parent=55 // pred_check_branch
        %992 = sbr.rel (%p990) target = $region60
      $region59: #{tpu_custom_call.1} parent=55 // pred_region
        %s993 = smul.u32 16, %s20
      $region60: #{tpu_custom_call.1} parent=55 // pred_fallthru
        _
    $region56: #{tpu_custom_call.1} parent=5 // pred_fallthru
      _
    %p994 = scmp.le.s32.totalorder 2, %s15
    // Predicated region
    $region61: #{tpu_custom_call.1} parent=5 // pred_check
      %p995 = pneg %p994
    $region62: #{tpu_custom_call.1} parent=5 // pred_check_branch
      %997 = sbr.rel (%p995) target = $region64
    $region63: #{tpu_custom_call.1} parent=5 // pred_region
      %s998 = ssub.s32 %s15, 2
      // Predicated region
      $region65: #{tpu_custom_call.1} parent=63 // pred_check
        %p999 = pneg %p238
      $region66: #{tpu_custom_call.1} parent=63 // pred_check_branch
        %1001 = sbr.rel (%p999) target = $region68
      $region67: #{tpu_custom_call.1} parent=63 // pred_region
        %s1002 = smul.u32 16, %s21
        %p1003 = scmp.lt.s32.totalorder %s1002, 31
        %s1004 = scalar_select %p1003, %s1002, 31
        %s1005 = smul.addr %s1004, 8
        %s1006 = scalar_lea.vmem %s9, %s1005
      $region68: #{tpu_custom_call.1} parent=63 // pred_fallthru
        _
    $region64: #{tpu_custom_call.1} parent=5 // pred_fallthru
      _
  $region6: #{tpu_custom_call.1} parent=0 // loop_footer
    %s19 = sadd.s32 1, %s15
  $region7: #{tpu_custom_call.1} parent=0 // loop_footer_branch
    %14 = sbr.rel target = $region3
  $region8: #{tpu_custom_call.1} parent=0 // loop_exit
    _

// kernel: tpu_custom_call.1
$region0: #{tpu_custom_call.1}
  #allocation0 [shape = 'u32[]', space=smem, size = 0x4, offset = 0x4, fixed_abs, tag = 'smem constant byte address 0x4 - core index']
  #allocation1 [shape = 'u32[144,128]{1,0:T(1,128)}', space=vmem, size = 0x12000, scoped, tag = 'internal scratch']
  %s0 = inlined_call_operand.vmem [shape: f32[256,32], index: 0, kind: input, shape index: {}]
  %s1 = inlined_call_operand.vmem [shape: bf16[32,128], index: 1, kind: input, shape index: {}]
  %s2 = inlined_call_operand.vmem [shape: f32[1,128], index: 2, kind: input, shape index: {}]
  %s3 = inlined_call_operand.vmem [shape: f32[1,128], index: 3, kind: input, shape index: {}]
  %s4 = inlined_call_operand.vmem [shape: bf16[128,128], index: 4, kind: input, shape index: {}]
  %s5 = inlined_call_operand.vmem [shape: f32[1,128], index: 5, kind: input, shape index: {}]
  %s6 = inlined_call_operand.vmem [shape: f32[1,128], index: 6, kind: input, shape index: {}]
  %s7 = inlined_call_operand.vmem [shape: bf16[128,8], index: 7, kind: input, shape index: {}]
  %s8 = inlined_call_operand.vmem [shape: f32[1,8], index: 8, kind: input, shape index: {}]
  %s9 = inlined_call_operand.vmem [shape: f32[256,8], index: 9, kind: output, shape index: {}]
  %s10 = sld [smem:[#allocation0]]
  $region69: #{tpu_custom_call.1} parent=0
    _
  %s12 = ssub.s32 1, %s10
  %s13 = scalar_select 0, %s12, %s10
  loop: start=0, step=1, limit=4
  $region2: #{tpu_custom_call.1} parent=0 // loop_pre_header
    _
  $region3: #{tpu_custom_call.1} parent=0 // loop_header
    %s15 = sphi 0, %s19
    %p16 = scmp.ge.s32.totalorder %s15, 4
    %s25 = sphi 0, %s27
    %s28 = sphi 0, %s25
    %s29 = sphi 0, %s28
    %s45 = sphi 0, %s29
    %s49 = sphi 0, %s49
    %s51 = sphi 0, %s49
    %s52 = sphi 0, %s51
    %s66 = sphi 0, %s52
    %s70 = sphi 0, %s70
    %s72 = sphi 0, %s70
    %s73 = sphi 0, %s72
    %s87 = sphi 0, %s73
    %s91 = sphi 0, %s91
    %s93 = sphi 0, %s91
    %s94 = sphi 0, %s93
    %s108 = sphi 0, %s94
    %s112 = sphi 0, %s112
    %s114 = sphi 0, %s112
    %s115 = sphi 0, %s114
    %s129 = sphi 0, %s115
    %s133 = sphi 0, %s133
    %s135 = sphi 0, %s133
    %s136 = sphi 0, %s135
    %s150 = sphi 0, %s136
    %s154 = sphi 0, %s154
    %s156 = sphi 0, %s154
    %s157 = sphi 0, %s156
    %s171 = sphi 0, %s157
    %s175 = sphi 0, %s175
    %s177 = sphi 0, %s175
    %s178 = sphi 0, %s177
    %s192 = sphi 0, %s178
    %s196 = sphi 0, %s196
    %s198 = sphi 0, %s196
    %s199 = sphi 0, %s198
    %s213 = sphi 0, %s199
    %s219 = sphi 0, %s221
    %s222 = sphi 0, %s219
    %s223 = sphi 0, %s222
    %s239 = sphi 0, %s223
  $region4: #{tpu_custom_call.1} parent=0 // loop_header_branch
    %18 = sbr.rel (%p16) target = $region8
  $region5: #{tpu_custom_call.1} parent=0 // loop_body
    %s20 = ssub.s32 %s15, 1
    %s21 = ssub.s32 %s15, 2
    %s22 = sadd.s32 %s15, 1
    %s23 = ssub.s32 %s15, %s22
    %p24 = scmp.eq.s32.totalorder %s23, 0
    %s26 = sadd.s32 %s25, 1
    %s27 = scalar_select %p24, %s25, %s26
    %p30 = pneg %p24
    %p31 = scmp.eq.s32.totalorder %s15, 1
    %p32 = por %p30, %p31
    %p33 = scmp.ne.s32.totalorder %s25, %s28
    %p34 = scmp.eq.s32.totalorder %s15, 0
    %p35 = por %p33, %p34
    %p36 = scmp.ne.s32.totalorder %s25, %s28
    %p37 = scmp.eq.s32.totalorder %s20, 1
    %p38 = por %p36, %p37
    %p39 = scmp.ne.s32.totalorder %s28, %s29
    %p40 = scmp.eq.s32.totalorder %s20, 0
    %p41 = por %p39, %p40
    %p42 = scmp.ne.s32.totalorder %s28, %s29
    %p43 = scmp.eq.s32.totalorder %s21, 1
    %p44 = por %p42, %p43
    %p46 = scmp.ne.s32.totalorder %s29, %s45
    %p47 = scmp.eq.s32.totalorder %s21, 0
    %p48 = por %p46, %p47
    %s50 = sadd.s32 %s49, 1
    %p53 = scmp.eq.s32.totalorder %s15, 1
    %p54 = scmp.ne.s32.totalorder %s49, %s51
    %p55 = scmp.eq.s32.totalorder %s15, 0
    %p56 = por %p54, %p55
    %p57 = scmp.ne.s32.totalorder %s49, %s51
    %p58 = scmp.eq.s32.totalorder %s20, 1
    %p59 = por %p57, %p58
    %p60 = scmp.ne.s32.totalorder %s51, %s52
    %p61 = scmp.eq.s32.totalorder %s20, 0
    %p62 = por %p60, %p61
    %p63 = scmp.ne.s32.totalorder %s51, %s52
    %p64 = scmp.eq.s32.totalorder %s21, 1
    %p65 = por %p63, %p64
    %p67 = scmp.ne.s32.totalorder %s52, %s66
    %p68 = scmp.eq.s32.totalorder %s21, 0
    %p69 = por %p67, %p68
    %s71 = sadd.s32 %s70, 1
    %p74 = scmp.eq.s32.totalorder %s15, 1
    %p75 = scmp.ne.s32.totalorder %s70, %s72
    %p76 = scmp.eq.s32.totalorder %s15, 0
    %p77 = por %p75, %p76
    %p78 = scmp.ne.s32.totalorder %s70, %s72
    %p79 = scmp.eq.s32.totalorder %s20, 1
    %p80 = por %p78, %p79
    %p81 = scmp.ne.s32.totalorder %s72, %s73
    %p82 = scmp.eq.s32.totalorder %s20, 0
    %p83 = por %p81, %p82
    %p84 = scmp.ne.s32.totalorder %s72, %s73
    %p85 = scmp.eq.s32.totalorder %s21, 1
    %p86 = por %p84, %p85
    %p88 = scmp.ne.s32.totalorder %s73, %s87
    %p89 = scmp.eq.s32.totalorder %s21, 0
    %p90 = por %p88, %p89
    %s92 = sadd.s32 %s91, 1
    %p95 = scmp.eq.s32.totalorder %s15, 1
    %p96 = scmp.ne.s32.totalorder %s91, %s93
    %p97 = scmp.eq.s32.totalorder %s15, 0
    %p98 = por %p96, %p97
    %p99 = scmp.ne.s32.totalorder %s91, %s93
    %p100 = scmp.eq.s32.totalorder %s20, 1
    %p101 = por %p99, %p100
    %p102 = scmp.ne.s32.totalorder %s93, %s94
    %p103 = scmp.eq.s32.totalorder %s20, 0
    %p104 = por %p102, %p103
    %p105 = scmp.ne.s32.totalorder %s93, %s94
    %p106 = scmp.eq.s32.totalorder %s21, 1
    %p107 = por %p105, %p106
    %p109 = scmp.ne.s32.totalorder %s94, %s108
    %p110 = scmp.eq.s32.totalorder %s21, 0
    %p111 = por %p109, %p110
    %s113 = sadd.s32 %s112, 1
    %p116 = scmp.eq.s32.totalorder %s15, 1
    %p117 = scmp.ne.s32.totalorder %s112, %s114
    %p118 = scmp.eq.s32.totalorder %s15, 0
    %p119 = por %p117, %p118
    %p120 = scmp.ne.s32.totalorder %s112, %s114
    %p121 = scmp.eq.s32.totalorder %s20, 1
    %p122 = por %p120, %p121
    %p123 = scmp.ne.s32.totalorder %s114, %s115
    %p124 = scmp.eq.s32.totalorder %s20, 0
    %p125 = por %p123, %p124
    %p126 = scmp.ne.s32.totalorder %s114, %s115
    %p127 = scmp.eq.s32.totalorder %s21, 1
    %p128 = por %p126, %p127
    %p130 = scmp.ne.s32.totalorder %s115, %s129
    %p131 = scmp.eq.s32.totalorder %s21, 0
    %p132 = por %p130, %p131
    %s134 = sadd.s32 %s133, 1
    %p137 = scmp.eq.s32.totalorder %s15, 1
    %p138 = scmp.ne.s32.totalorder %s133, %s135
    %p139 = scmp.eq.s32.totalorder %s15, 0
    %p140 = por %p138, %p139
    %p141 = scmp.ne.s32.totalorder %s133, %s135
    %p142 = scmp.eq.s32.totalorder %s20, 1
    %p143 = por %p141, %p142
    %p144 = scmp.ne.s32.totalorder %s135, %s136
    %p145 = scmp.eq.s32.totalorder %s20, 0
    %p146 = por %p144, %p145
    %p147 = scmp.ne.s32.totalorder %s135, %s136
    %p148 = scmp.eq.s32.totalorder %s21, 1
    %p149 = por %p147, %p148
    %p151 = scmp.ne.s32.totalorder %s136, %s150
    %p152 = scmp.eq.s32.totalorder %s21, 0
    %p153 = por %p151, %p152
    %s155 = sadd.s32 %s154, 1
    %p158 = scmp.eq.s32.totalorder %s15, 1
    %p159 = scmp.ne.s32.totalorder %s154, %s156
    %p160 = scmp.eq.s32.totalorder %s15, 0
    %p161 = por %p159, %p160
    %p162 = scmp.ne.s32.totalorder %s154, %s156
    %p163 = scmp.eq.s32.totalorder %s20, 1
    %p164 = por %p162, %p163
    %p165 = scmp.ne.s32.totalorder %s156, %s157
    %p166 = scmp.eq.s32.totalorder %s20, 0
    %p167 = por %p165, %p166
    %p168 = scmp.ne.s32.totalorder %s156, %s157
    %p169 = scmp.eq.s32.totalorder %s21, 1
    %p170 = por %p168, %p169
    %p172 = scmp.ne.s32.totalorder %s157, %s171
    %p173 = scmp.eq.s32.totalorder %s21, 0
    %p174 = por %p172, %p173
    %s176 = sadd.s32 %s175, 1
    %p179 = scmp.eq.s32.totalorder %s15, 1
    %p180 = scmp.ne.s32.totalorder %s175, %s177
    %p181 = scmp.eq.s32.totalorder %s15, 0
    %p182 = por %p180, %p181
    %p183 = scmp.ne.s32.totalorder %s175, %s177
    %p184 = scmp.eq.s32.totalorder %s20, 1
    %p185 = por %p183, %p184
    %p186 = scmp.ne.s32.totalorder %s177, %s178
    %p187 = scmp.eq.s32.totalorder %s20, 0
    %p188 = por %p186, %p187
    %p189 = scmp.ne.s32.totalorder %s177, %s178
    %p190 = scmp.eq.s32.totalorder %s21, 1
    %p191 = por %p189, %p190
    %p193 = scmp.ne.s32.totalorder %s178, %s192
    %p194 = scmp.eq.s32.totalorder %s21, 0
    %p195 = por %p193, %p194
    %s197 = sadd.s32 %s196, 1
    %p200 = scmp.eq.s32.totalorder %s15, 1
    %p201 = scmp.ne.s32.totalorder %s196, %s198
    %p202 = scmp.eq.s32.totalorder %s15, 0
    %p203 = por %p201, %p202
    %p204 = scmp.ne.s32.totalorder %s196, %s198
    %p205 = scmp.eq.s32.totalorder %s20, 1
    %p206 = por %p204, %p205
    %p207 = scmp.ne.s32.totalorder %s198, %s199
    %p208 = scmp.eq.s32.totalorder %s20, 0
    %p209 = por %p207, %p208
    %p210 = scmp.ne.s32.totalorder %s198, %s199
    %p211 = scmp.eq.s32.totalorder %s21, 1
    %p212 = por %p210, %p211
    %p214 = scmp.ne.s32.totalorder %s199, %s213
    %p215 = scmp.eq.s32.totalorder %s21, 0
    %p216 = por %p214, %p215
    %s217 = ssub.s32 %s15, %s22
    %p218 = scmp.eq.s32.totalorder %s217, 0
    %s220 = sadd.s32 %s219, 1
    %s221 = scalar_select %p218, %s219, %s220
    %p224 = pneg %p218
    %p225 = scmp.eq.s32.totalorder %s15, 1
    %p226 = por %p224, %p225
    %p227 = scmp.ne.s32.totalorder %s219, %s222
    %p228 = scmp.eq.s32.totalorder %s15, 0
    %p229 = por %p227, %p228
    %p230 = scmp.ne.s32.totalorder %s219, %s222
    %p231 = scmp.eq.s32.totalorder %s20, 1
    %p232 = por %p230, %p231
    %p233 = scmp.ne.s32.totalorder %s222, %s223
    %p234 = scmp.eq.s32.totalorder %s20, 0
    %p235 = por %p233, %p234
    %p236 = scmp.ne.s32.totalorder %s222, %s223
    %p237 = scmp.eq.s32.totalorder %s21, 1
    %p238 = por %p236, %p237
    %p240 = scmp.ne.s32.totalorder %s223, %s239
    %p241 = scmp.eq.s32.totalorder %s21, 0
    %p242 = por %p240, %p241
    %p243 = scmp.le.s32.totalorder 1, %s15
    %p244 = scmp.lt.s32.totalorder %s15, 3
    %p245 = pnand %p243, %p244
    %p246 = pneg %p245
    // Predicated region
    $region9: #{tpu_custom_call.1} parent=5 // pred_check
      _
    $region10: #{tpu_custom_call.1} parent=5 // pred_check_branch
      %248 = sbr.rel (%p245) target = $region12
    $region11: #{tpu_custom_call.1} parent=5 // pred_region
      %s249 = ssub.s32 %s15, 1
      // Predicated region
      $region13: #{tpu_custom_call.1} parent=11 // pred_check
        %p250 = pneg %p62
      $region14: #{tpu_custom_call.1} parent=11 // pred_check_branch
        %252 = sbr.rel (%p250) target = $region16
      $region15: #{tpu_custom_call.1} parent=11 // pred_region
        _
      $region16: #{tpu_custom_call.1} parent=11 // pred_fallthru
        _
      // Predicated region
      $region17: #{tpu_custom_call.1} parent=11 // pred_check
        %p253 = pneg %p83
      $region18: #{tpu_custom_call.1} parent=11 // pred_check_branch
        %255 = sbr.rel (%p253) target = $region20
      $region19: #{tpu_custom_call.1} parent=11 // pred_region
        _
      $region20: #{tpu_custom_call.1} parent=11 // pred_fallthru
        _
      // Predicated region
      $region21: #{tpu_custom_call.1} parent=11 // pred_check
        %p256 = pneg %p104
      $region22: #{tpu_custom_call.1} parent=11 // pred_check_branch
        %258 = sbr.rel (%p256) target = $region24
      $region23: #{tpu_custom_call.1} parent=11 // pred_region
        _
      $region24: #{tpu_custom_call.1} parent=11 // pred_fallthru
        _
      // Predicated region
      $region25: #{tpu_custom_call.1} parent=11 // pred_check
        %p259 = pneg %p125
      $region26: #{tpu_custom_call.1} parent=11 // pred_check_branch
        %261 = sbr.rel (%p259) target = $region28
      $region27: #{tpu_custom_call.1} parent=11 // pred_region
        _
      $region28: #{tpu_custom_call.1} parent=11 // pred_fallthru
        _
      // Predicated region
      $region29: #{tpu_custom_call.1} parent=11 // pred_check
        %p262 = pneg %p146
      $region30: #{tpu_custom_call.1} parent=11 // pred_check_branch
        %264 = sbr.rel (%p262) target = $region32
      $region31: #{tpu_custom_call.1} parent=11 // pred_region
        _
      $region32: #{tpu_custom_call.1} parent=11 // pred_fallthru
        _
      // Predicated region
      $region33: #{tpu_custom_call.1} parent=11 // pred_check
        %p265 = pneg %p167
      $region34: #{tpu_custom_call.1} parent=11 // pred_check_branch
        %267 = sbr.rel (%p265) target = $region36
      $region35: #{tpu_custom_call.1} parent=11 // pred_region
        _
      $region36: #{tpu_custom_call.1} parent=11 // pred_fallthru
        _
      // Predicated region
      $region37: #{tpu_custom_call.1} parent=11 // pred_check
        %p268 = pneg %p188
      $region38: #{tpu_custom_call.1} parent=11 // pred_check_branch
        %270 = sbr.rel (%p268) target = $region40
      $region39: #{tpu_custom_call.1} parent=11 // pred_region
        _
      $region40: #{tpu_custom_call.1} parent=11 // pred_fallthru
        _
      // Predicated region
      $region41: #{tpu_custom_call.1} parent=11 // pred_check
        %p271 = pneg %p209
      $region42: #{tpu_custom_call.1} parent=11 // pred_check_branch
        %273 = sbr.rel (%p271) target = $region44
      $region43: #{tpu_custom_call.1} parent=11 // pred_region
        _
      $region44: #{tpu_custom_call.1} parent=11 // pred_fallthru
        _
    $region12: #{tpu_custom_call.1} parent=5 // pred_fallthru
      _
    %p274 = scmp.lt.s32.totalorder %s15, 2
    // Predicated region
    $region45: #{tpu_custom_call.1} parent=5 // pred_check
      %p275 = pneg %p274
    $region46: #{tpu_custom_call.1} parent=5 // pred_check_branch
      %277 = sbr.rel (%p275) target = $region48
    $region47: #{tpu_custom_call.1} parent=5 // pred_region
      // Predicated region
      $region49: #{tpu_custom_call.1} parent=47 // pred_check
        %p278 = pneg %p35
      $region50: #{tpu_custom_call.1} parent=47 // pred_check_branch
        %280 = sbr.rel (%p278) target = $region52
      $region51: #{tpu_custom_call.1} parent=47 // pred_region
        %s281 = smul.u32 16, %s15
        %p282 = scmp.lt.s32.totalorder %s281, 31
        %s283 = scalar_select %p282, %s281, 31
        %s284 = smul.addr %s283, 8
        %s285 = scalar_lea.vmem %s0, %s284
        %s286 = smul.u32 16, %s15
      $region52: #{tpu_custom_call.1} parent=47 // pred_fallthru
        _
    $region48: #{tpu_custom_call.1} parent=5 // pred_fallthru
      _
    %p287 = scmp.le.s32.totalorder 1, %s15
    %p288 = scmp.lt.s32.totalorder %s15, 3
    %p289 = pnand %p287, %p288
    %p290 = pneg %p289
    // Predicated region
    $region53: #{tpu_custom_call.1} parent=5 // pred_check
      _
    $region54: #{tpu_custom_call.1} parent=5 // pred_check_branch
      %292 = sbr.rel (%p289) target = $region56
    $region55: #{tpu_custom_call.1} parent=5 // pred_region
      %s293 = ssub.s32 %s15, 1
      %s294 = smul.u32 16, %s20
      %p295 = scmp.lt.s32.totalorder %s294, 31
      %s296 = scalar_select %p295, %s294, 31
      %s297 = smul.addr %s296, 8
      %s298 = scalar_lea.vmem %s0, %s297
      %p299 = pneg %p41
      %p300 = pneg %p38
      %p301 = pneg %p62
      %p302 = pneg %p59
      %p303 = pneg %p83
      %p304 = pneg %p80
      %p305 = pneg %p104
      %p306 = pneg %p101
      %p307 = pneg %p125
      %p308 = pneg %p122
      %p309 = pneg %p146
      %p310 = pneg %p143
      %p311 = pneg %p167
      %p312 = pneg %p164
      %p313 = pneg %p188
      %p314 = pneg %p185
      %p315 = pneg %p209
      %p316 = pneg %p206
      %p317 = pneg %p235
      %p318 = pneg %p232
      %s319 = smul.u32 16, %s20
      %p320 = scmp.lt.s32.totalorder %s319, 31
      %s321 = scalar_select %p320, %s319, 31
      %s322 = smul.addr %s321, 8
      %s323 = scalar_lea.vmem %s9, %s322
      %s324 = smul.u32 16, %s20
      %p325 = scmp.lt.s32.totalorder %s324, 31
      %s326 = scalar_select %p325, %s324, 31
      %s327 = smul.addr %s326, 8
      %s328 = scalar_lea.vmem %s0, %s327
      %s329 = smul.u32 16, %s20
      %s330 = smul.u32 16, %s20
      %p331 = scmp.lt.s32.totalorder %s330, 31
      %s332 = scalar_select %p331, %s330, 31
      %s333 = smul.addr %s332, 8
      %s334 = scalar_lea.vmem %s9, %s333
      %s335 = smul.u32 16, %s20
      %v337 = vld [vmem:[%s328] sm:$0xff]
      %v338 = vld [vmem:[%s328 + $0x8] sm:$0xff]
      %v339 = vld [vmem:[%s328 + $0x10] sm:$0xff]
      %v340 = vld [vmem:[%s328 + $0x18] sm:$0xff]
      %v341 = vld [vmem:[%s328 + $0x20] sm:$0xff]
      %v342 = vld [vmem:[%s328 + $0x28] sm:$0xff]
      %v343 = vld [vmem:[%s328 + $0x30] sm:$0xff]
      %v344 = vld [vmem:[%s328 + $0x38] sm:$0xff]
      %v345 = vld [vmem:[%s328 + $0x40] sm:$0xff]
      %v346 = vld [vmem:[%s328 + $0x48] sm:$0xff]
      %v347 = vld [vmem:[%s328 + $0x50] sm:$0xff]
      %v348 = vld [vmem:[%s328 + $0x58] sm:$0xff]
      %v349 = vld [vmem:[%s328 + $0x60] sm:$0xff]
      %v350 = vld [vmem:[%s328 + $0x68] sm:$0xff]
      %v351 = vld [vmem:[%s328 + $0x70] sm:$0xff]
      %v352 = vld [vmem:[%s328 + $0x78] sm:$0xff]
      %v353 = vpack.c.bf16 %v338, %v337
      %v354 = vpack.c.bf16 %v340, %v339
      %v355 = vpack.c.bf16 %v342, %v341
      %v356 = vpack.c.bf16 %v344, %v343
      %v357 = vpack.c.bf16 %v346, %v345
      %v358 = vpack.c.bf16 %v348, %v347
      %v359 = vpack.c.bf16 %v350, %v349
      %v360 = vpack.c.bf16 %v352, %v351
      %v361 = vld [vmem:[%s1] sm:$0xf]
      %v362 = vld [vmem:[%s1 + $0x4] sm:$0xf]
      %v363 = vld [vmem:[%s1 + $0x8] sm:$0xf]
      %v364 = vld [vmem:[%s1 + $0xc] sm:$0xf]
      %v369 = vunpack.c.l.b16 %v361
      %v370 = vunpack.c.l.b16 %v362
      %v371 = vunpack.c.l.b16 %v363
      %v372 = vunpack.c.l.b16 %v364
      %v373 = vpack.c.b16 %v370, %v369
      %v374 = vpack.c.b16 %v372, %v371
      %vm377 = vcmask 261120
      %v379 = vsel %vm377, %v353, 0
      %v382 = vsel %vm377, %v354, 0
      %v385 = vsel %vm377, %v355, 0
      %v388 = vsel %vm377, %v356, 0
      %v391 = vsel %vm377, %v357, 0
      %v394 = vsel %vm377, %v358, 0
      %v397 = vsel %vm377, %v359, 0
      %v400 = vsel %vm377, %v360, 0
      %402 = vmatprep.subr.bf16.mxu0 0
      %403 = vmatpush1.bf16.msra.mxu0 %v373
      %404 = vmatprep.subr.bf16.mxu0 0
      %405 = vmatpush1.bf16.msra.mxu0 %v374
      %406 = vmatprep.subr.bf16.mxu0 0
      %407 = vmatpush1.bf16.msra.mxu0 0
      %408 = vmatprep.subr.bf16.mxu0 0
      %409 = vmatpush1.bf16.msra.mxu0 0
      %410 = vmatprep.subr.bf16.mxu0 0
      %411 = vmatpush1.bf16.msra.mxu0 0
      %412 = vmatprep.subr.bf16.mxu0 0
      %413 = vmatpush1.bf16.msra.mxu0 0
      %414 = vmatprep.subr.bf16.mxu0 0
      %415 = vmatpush1.bf16.msra.mxu0 0
      %416 = vmatprep.subr.bf16.mxu0 0
      %417 = vmatpush1.bf16.msra.mxu0 0
      %418 = vmatprep.subr.bf16.mxu0 0
      %419 = vmatpush1.bf16.msra.mxu0 0
      %420 = vmatprep.subr.bf16.mxu0 0
      %421 = vmatpush1.bf16.msra.mxu0 0
      %422 = vmatprep.subr.bf16.mxu0 0
      %423 = vmatpush1.bf16.msra.mxu0 0
      %424 = vmatprep.subr.bf16.mxu0 0
      %425 = vmatpush1.bf16.msra.mxu0 0
      %426 = vmatprep.subr.bf16.mxu0 0
      %427 = vmatpush1.bf16.msra.mxu0 0
      %428 = vmatprep.subr.bf16.mxu0 0
      %429 = vmatpush1.bf16.msra.mxu0 0
      %430 = vmatprep.subr.bf16.mxu0 0
      %431 = vmatpush1.bf16.msra.mxu0 0
      %432 = vmatprep.subr.bf16.mxu0 0
      %433 = vmatpush1.bf16.msra.mxu0 0
      %434 = vmatprep.mubr.bf16.mxu0 0
      %435 = vmatmul.mubr.bf16.gmra.mrb[0].mxu0 %v379
      %v436 = vpop.f32.mrb[0].mxu0
      %v437 = vadd.f32 0.0, %v436
      %v438 = vpop.f32.mrb[0].mxu0
      %v439 = vpop.f32.mrb[0].mxu0
      %v440 = vadd.f32 0.0, %v439
      %v441 = vpop.f32.mrb[0].mxu0
      %442 = vmatprep.mubr.bf16.mxu0 0
      %443 = vmatmul.mubr.bf16.gmra.mrb[0].mxu0 %v382
      %v444 = vpop.f32.mrb[0].mxu0
      %v445 = vadd.f32 0.0, %v444
      %v446 = vpop.f32.mrb[0].mxu0
      %v447 = vpop.f32.mrb[0].mxu0
      %v448 = vadd.f32 0.0, %v447
      %v449 = vpop.f32.mrb[0].mxu0
      %450 = vmatprep.mubr.bf16.mxu0 0
      %451 = vmatmul.mubr.bf16.gmra.mrb[0].mxu0 %v385
      %v452 = vpop.f32.mrb[0].mxu0
      %v453 = vadd.f32 0.0, %v452
      %v454 = vpop.f32.mrb[0].mxu0
      %v455 = vpop.f32.mrb[0].mxu0
      %v456 = vadd.f32 0.0, %v455
      %v457 = vpop.f32.mrb[0].mxu0
      %458 = vmatprep.mubr.bf16.mxu0 0
      %459 = vmatmul.mubr.bf16.gmra.mrb[0].mxu0 %v388
      %v460 = vpop.f32.mrb[0].mxu0
      %v461 = vadd.f32 0.0, %v460
      %v462 = vpop.f32.mrb[0].mxu0
      %v463 = vpop.f32.mrb[0].mxu0
      %v464 = vadd.f32 0.0, %v463
      %v465 = vpop.f32.mrb[0].mxu0
      %466 = vmatprep.mubr.bf16.mxu0 0
      %467 = vmatmul.mubr.bf16.gmra.mrb[0].mxu0 %v391
      %v468 = vpop.f32.mrb[0].mxu0
      %v469 = vadd.f32 0.0, %v468
      %v470 = vpop.f32.mrb[0].mxu0
      %v471 = vpop.f32.mrb[0].mxu0
      %v472 = vadd.f32 0.0, %v471
      %v473 = vpop.f32.mrb[0].mxu0
      %474 = vmatprep.mubr.bf16.mxu0 0
      %475 = vmatmul.mubr.bf16.gmra.mrb[0].mxu0 %v394
      %v476 = vpop.f32.mrb[0].mxu0
      %v477 = vadd.f32 0.0, %v476
      %v478 = vpop.f32.mrb[0].mxu0
      %v479 = vpop.f32.mrb[0].mxu0
      %v480 = vadd.f32 0.0, %v479
      %v481 = vpop.f32.mrb[0].mxu0
      %482 = vmatprep.mubr.bf16.mxu0 0
      %483 = vmatmul.mubr.bf16.gmra.mrb[0].mxu0 %v397
      %v484 = vpop.f32.mrb[0].mxu0
      %v485 = vadd.f32 0.0, %v484
      %v486 = vpop.f32.mrb[0].mxu0
      %v487 = vpop.f32.mrb[0].mxu0
      %v488 = vadd.f32 0.0, %v487
      %v489 = vpop.f32.mrb[0].mxu0
      %490 = vmatprep.mubr.bf16.mxu0 0
      %491 = vmatmul.mubr.bf16.gmra.mrb[0].mxu0 %v400
      %v492 = vpop.f32.mrb[0].mxu0
      %v493 = vadd.f32 0.0, %v492
      %v494 = vpop.f32.mrb[0].mxu0
      %v495 = vpop.f32.mrb[0].mxu0
      %v496 = vadd.f32 0.0, %v495
      %v497 = vpop.f32.mrb[0].mxu0
      %498 = vdwg.mxu0
      %v499 = vld [vmem:[%s2] sm:$0x1]
      %v501 = vlaneseq
      %v502 = vshrl.u32 %v501, 7
      %v503 = vsub.s32 0, %v502
      %v504 = vrot.slane %v499, %v503
      %v506 = vmul.f32 %v437, %v504
      %v507 = vmul.f32 %v440, %v504
      %v508 = vmul.f32 %v445, %v504
      %v509 = vmul.f32 %v448, %v504
      %v510 = vmul.f32 %v453, %v504
      %v511 = vmul.f32 %v456, %v504
      %v512 = vmul.f32 %v461, %v504
      %v513 = vmul.f32 %v464, %v504
      %v514 = vmul.f32 %v469, %v504
      %v515 = vmul.f32 %v472, %v504
      %v516 = vmul.f32 %v477, %v504
      %v517 = vmul.f32 %v480, %v504
      %v518 = vmul.f32 %v485, %v504
      %v519 = vmul.f32 %v488, %v504
      %v520 = vmul.f32 %v493, %v504
      %v521 = vmul.f32 %v496, %v504
      %v522 = vld [vmem:[%s3] sm:$0x1]
      %v524 = vlaneseq
      %v525 = vshrl.u32 %v524, 7
      %v526 = vsub.s32 0, %v525
      %v527 = vrot.slane %v522, %v526
      %v529 = vadd.f32 %v506, %v527
      %v530 = vadd.f32 %v507, %v527
      %v531 = vadd.f32 %v508, %v527
      %v532 = vadd.f32 %v509, %v527
      %v533 = vadd.f32 %v510, %v527
      %v534 = vadd.f32 %v511, %v527
      %v535 = vadd.f32 %v512, %v527
      %v536 = vadd.f32 %v513, %v527
      %v537 = vadd.f32 %v514, %v527
      %v538 = vadd.f32 %v515, %v527
      %v539 = vadd.f32 %v516, %v527
      %v540 = vadd.f32 %v517, %v527
      %v541 = vadd.f32 %v518, %v527
      %v542 = vadd.f32 %v519, %v527
      %v543 = vadd.f32 %v520, %v527
      %v544 = vadd.f32 %v521, %v527
      %v545 = vmax.f32 %v529, 0.0
      %v546 = vmax.f32 %v530, 0.0
      %v547 = vmax.f32 %v531, 0.0
      %v548 = vmax.f32 %v532, 0.0
      %v549 = vmax.f32 %v533, 0.0
      %v550 = vmax.f32 %v534, 0.0
      %v551 = vmax.f32 %v535, 0.0
      %v552 = vmax.f32 %v536, 0.0
      %v553 = vmax.f32 %v537, 0.0
      %v554 = vmax.f32 %v538, 0.0
      %v555 = vmax.f32 %v539, 0.0
      %v556 = vmax.f32 %v540, 0.0
      %v557 = vmax.f32 %v541, 0.0
      %v558 = vmax.f32 %v542, 0.0
      %v559 = vmax.f32 %v543, 0.0
      %v560 = vmax.f32 %v544, 0.0
      %v561 = vpack.c.bf16 %v546, %v545
      %v562 = vpack.c.bf16 %v548, %v547
      %v563 = vpack.c.bf16 %v550, %v549
      %v564 = vpack.c.bf16 %v552, %v551
      %v565 = vpack.c.bf16 %v554, %v553
      %v566 = vpack.c.bf16 %v556, %v555
      %v567 = vpack.c.bf16 %v558, %v557
      %v568 = vpack.c.bf16 %v560, %v559
      %v569 = vld [vmem:[%s4] sm:$0xf]
      %v570 = vld [vmem:[%s4 + $0x4] sm:$0xf]
      %v571 = vld [vmem:[%s4 + $0x8] sm:$0xf]
      %v572 = vld [vmem:[%s4 + $0xc] sm:$0xf]
      %v573 = vld [vmem:[%s4 + $0x10] sm:$0xf]
      %v574 = vld [vmem:[%s4 + $0x14] sm:$0xf]
      %v575 = vld [vmem:[%s4 + $0x18] sm:$0xf]
      %v576 = vld [vmem:[%s4 + $0x1c] sm:$0xf]
      %v577 = vld [vmem:[%s4 + $0x20] sm:$0xf]
      %v578 = vld [vmem:[%s4 + $0x24] sm:$0xf]
      %v579 = vld [vmem:[%s4 + $0x28] sm:$0xf]
      %v580 = vld [vmem:[%s4 + $0x2c] sm:$0xf]
      %v581 = vld [vmem:[%s4 + $0x30] sm:$0xf]
      %v582 = vld [vmem:[%s4 + $0x34] sm:$0xf]
      %v583 = vld [vmem:[%s4 + $0x38] sm:$0xf]
      %v584 = vld [vmem:[%s4 + $0x3c] sm:$0xf]
      %v601 = vunpack.c.l.b16 %v569
      %v602 = vunpack.c.l.b16 %v570
      %v603 = vunpack.c.l.b16 %v571
      %v604 = vunpack.c.l.b16 %v572
      %v605 = vunpack.c.l.b16 %v573
      %v606 = vunpack.c.l.b16 %v574
      %v607 = vunpack.c.l.b16 %v575
      %v608 = vunpack.c.l.b16 %v576
      %v609 = vunpack.c.l.b16 %v577
      %v610 = vunpack.c.l.b16 %v578
      %v611 = vunpack.c.l.b16 %v579
      %v612 = vunpack.c.l.b16 %v580
      %v613 = vunpack.c.l.b16 %v581
      %v614 = vunpack.c.l.b16 %v582
      %v615 = vunpack.c.l.b16 %v583
      %v616 = vunpack.c.l.b16 %v584
      %v617 = vpack.c.b16 %v602, %v601
      %v618 = vpack.c.b16 %v604, %v603
      %v619 = vpack.c.b16 %v606, %v605
      %v620 = vpack.c.b16 %v608, %v607
      %v621 = vpack.c.b16 %v610, %v609
      %v622 = vpack.c.b16 %v612, %v611
      %v623 = vpack.c.b16 %v614, %v613
      %v624 = vpack.c.b16 %v616, %v615
      %633 = vmatprep.subr.bf16.mxu0 0
      %634 = vmatpush1.bf16.msra.mxu0 %v617
      %635 = vmatprep.subr.bf16.mxu0 0
      %636 = vmatpush1.bf16.msra.mxu0 %v618
      %637 = vmatprep.subr.bf16.mxu0 0
      %638 = vmatpush1.bf16.msra.mxu0 %v619
      %639 = vmatprep.subr.bf16.mxu0 0
      %640 = vmatpush1.bf16.msra.mxu0 %v620
      %641 = vmatprep.subr.bf16.mxu0 0
      %642 = vmatpush1.bf16.msra.mxu0 %v621
      %643 = vmatprep.subr.bf16.mxu0 0
      %644 = vmatpush1.bf16.msra.mxu0 %v622
      %645 = vmatprep.subr.bf16.mxu0 0
      %646 = vmatpush1.bf16.msra.mxu0 %v623
      %647 = vmatprep.subr.bf16.mxu0 0
      %648 = vmatpush1.bf16.msra.mxu0 %v624
      %649 = vmatprep.subr.bf16.mxu0 0
      %650 = vmatpush1.bf16.msra.mxu0 0
      %651 = vmatprep.subr.bf16.mxu0 0
      %652 = vmatpush1.bf16.msra.mxu0 0
      %653 = vmatprep.subr.bf16.mxu0 0
      %654 = vmatpush1.bf16.msra.mxu0 0
      %655 = vmatprep.subr.bf16.mxu0 0
      %656 = vmatpush1.bf16.msra.mxu0 0
      %657 = vmatprep.subr.bf16.mxu0 0
      %658 = vmatpush1.bf16.msra.mxu0 0
      %659 = vmatprep.subr.bf16.mxu0 0
      %660 = vmatpush1.bf16.msra.mxu0 0
      %661 = vmatprep.subr.bf16.mxu0 0
      %662 = vmatpush1.bf16.msra.mxu0 0
      %663 = vmatprep.subr.bf16.mxu0 0
      %664 = vmatpush1.bf16.msra.mxu0 0
      %665 = vmatprep.mubr.bf16.mxu0 0
      %666 = vmatmul.mubr.bf16.gmra.mrb[0].mxu0 %v561
      %v667 = vpop.f32.mrb[0].mxu0
      %v668 = vadd.f32 0.0, %v667
      %v669 = vpop.f32.mrb[0].mxu0
      %v670 = vpop.f32.mrb[0].mxu0
      %v671 = vadd.f32 0.0, %v670
      %v672 = vpop.f32.mrb[0].mxu0
      %673 = vmatprep.mubr.bf16.mxu0 0
      %674 = vmatmul.mubr.bf16.gmra.mrb[0].mxu0 %v562
      %v675 = vpop.f32.mrb[0].mxu0
      %v676 = vadd.f32 0.0, %v675
      %v677 = vpop.f32.mrb[0].mxu0
      %v678 = vpop.f32.mrb[0].mxu0
      %v679 = vadd.f32 0.0, %v678
      %v680 = vpop.f32.mrb[0].mxu0
      %681 = vmatprep.mubr.bf16.mxu0 0
      %682 = vmatmul.mubr.bf16.gmra.mrb[0].mxu0 %v563
      %v683 = vpop.f32.mrb[0].mxu0
      %v684 = vadd.f32 0.0, %v683
      %v685 = vpop.f32.mrb[0].mxu0
      %v686 = vpop.f32.mrb[0].mxu0
      %v687 = vadd.f32 0.0, %v686
      %v688 = vpop.f32.mrb[0].mxu0
      %689 = vmatprep.mubr.bf16.mxu0 0
      %690 = vmatmul.mubr.bf16.gmra.mrb[0].mxu0 %v564
      %v691 = vpop.f32.mrb[0].mxu0
      %v692 = vadd.f32 0.0, %v691
      %v693 = vpop.f32.mrb[0].mxu0
      %v694 = vpop.f32.mrb[0].mxu0
      %v695 = vadd.f32 0.0, %v694
      %v696 = vpop.f32.mrb[0].mxu0
      %697 = vmatprep.mubr.bf16.mxu0 0
      %698 = vmatmul.mubr.bf16.gmra.mrb[0].mxu0 %v565
      %v699 = vpop.f32.mrb[0].mxu0
      %v700 = vadd.f32 0.0, %v699
      %v701 = vpop.f32.mrb[0].mxu0
      %v702 = vpop.f32.mrb[0].mxu0
      %v703 = vadd.f32 0.0, %v702
      %v704 = vpop.f32.mrb[0].mxu0
      %705 = vmatprep.mubr.bf16.mxu0 0
      %706 = vmatmul.mubr.bf16.gmra.mrb[0].mxu0 %v566
      %v707 = vpop.f32.mrb[0].mxu0
      %v708 = vadd.f32 0.0, %v707
      %v709 = vpop.f32.mrb[0].mxu0
      %v710 = vpop.f32.mrb[0].mxu0
      %v711 = vadd.f32 0.0, %v710
      %v712 = vpop.f32.mrb[0].mxu0
      %713 = vmatprep.mubr.bf16.mxu0 0
      %714 = vmatmul.mubr.bf16.gmra.mrb[0].mxu0 %v567
      %v715 = vpop.f32.mrb[0].mxu0
      %v716 = vadd.f32 0.0, %v715
      %v717 = vpop.f32.mrb[0].mxu0
      %v718 = vpop.f32.mrb[0].mxu0
      %v719 = vadd.f32 0.0, %v718
      %v720 = vpop.f32.mrb[0].mxu0
      %721 = vmatprep.mubr.bf16.mxu0 0
      %722 = vmatmul.mubr.bf16.gmra.mrb[0].mxu0 %v568
      %v723 = vpop.f32.mrb[0].mxu0
      %v724 = vadd.f32 0.0, %v723
      %v725 = vpop.f32.mrb[0].mxu0
      %v726 = vpop.f32.mrb[0].mxu0
      %v727 = vadd.f32 0.0, %v726
      %v728 = vpop.f32.mrb[0].mxu0
      %729 = vdwg.mxu0
      %v730 = vld [vmem:[%s5] sm:$0x1]
      %v732 = vlaneseq
      %v733 = vshrl.u32 %v732, 7
      %v734 = vsub.s32 0, %v733
      %v735 = vrot.slane %v730, %v734
      %v737 = vmul.f32 %v668, %v735
      %v738 = vmul.f32 %v671, %v735
      %v739 = vmul.f32 %v676, %v735
      %v740 = vmul.f32 %v679, %v735
      %v741 = vmul.f32 %v684, %v735
      %v742 = vmul.f32 %v687, %v735
      %v743 = vmul.f32 %v692, %v735
      %v744 = vmul.f32 %v695, %v735
      %v745 = vmul.f32 %v700, %v735
      %v746 = vmul.f32 %v703, %v735
      %v747 = vmul.f32 %v708, %v735
      %v748 = vmul.f32 %v711, %v735
      %v749 = vmul.f32 %v716, %v735
      %v750 = vmul.f32 %v719, %v735
      %v751 = vmul.f32 %v724, %v735
      %v752 = vmul.f32 %v727, %v735
      %v753 = vld [vmem:[%s6] sm:$0x1]
      %v755 = vlaneseq
      %v756 = vshrl.u32 %v755, 7
      %v757 = vsub.s32 0, %v756
      %v758 = vrot.slane %v753, %v757
      %v760 = vadd.f32 %v737, %v758
      %v761 = vadd.f32 %v738, %v758
      %v762 = vadd.f32 %v739, %v758
      %v763 = vadd.f32 %v740, %v758
      %v764 = vadd.f32 %v741, %v758
      %v765 = vadd.f32 %v742, %v758
      %v766 = vadd.f32 %v743, %v758
      %v767 = vadd.f32 %v744, %v758
      %v768 = vadd.f32 %v745, %v758
      %v769 = vadd.f32 %v746, %v758
      %v770 = vadd.f32 %v747, %v758
      %v771 = vadd.f32 %v748, %v758
      %v772 = vadd.f32 %v749, %v758
      %v773 = vadd.f32 %v750, %v758
      %v774 = vadd.f32 %v751, %v758
      %v775 = vadd.f32 %v752, %v758
      %v776 = vmax.f32 %v760, 0.0
      %v777 = vmax.f32 %v761, 0.0
      %v778 = vmax.f32 %v762, 0.0
      %v779 = vmax.f32 %v763, 0.0
      %v780 = vmax.f32 %v764, 0.0
      %v781 = vmax.f32 %v765, 0.0
      %v782 = vmax.f32 %v766, 0.0
      %v783 = vmax.f32 %v767, 0.0
      %v784 = vmax.f32 %v768, 0.0
      %v785 = vmax.f32 %v769, 0.0
      %v786 = vmax.f32 %v770, 0.0
      %v787 = vmax.f32 %v771, 0.0
      %v788 = vmax.f32 %v772, 0.0
      %v789 = vmax.f32 %v773, 0.0
      %v790 = vmax.f32 %v774, 0.0
      %v791 = vmax.f32 %v775, 0.0
      %v792 = vpack.c.bf16 %v777, %v776
      %v793 = vpack.c.bf16 %v779, %v778
      %v794 = vpack.c.bf16 %v781, %v780
      %v795 = vpack.c.bf16 %v783, %v782
      %v796 = vpack.c.bf16 %v785, %v784
      %v797 = vpack.c.bf16 %v787, %v786
      %v798 = vpack.c.bf16 %v789, %v788
      %v799 = vpack.c.bf16 %v791, %v790
      %v800 = vld [vmem:[%s7] sm:$0xf]
      %v801 = vld [vmem:[%s7 + $0x4] sm:$0xf]
      %v802 = vld [vmem:[%s7 + $0x8] sm:$0xf]
      %v803 = vld [vmem:[%s7 + $0xc] sm:$0xf]
      %v804 = vld [vmem:[%s7 + $0x10] sm:$0xf]
      %v805 = vld [vmem:[%s7 + $0x14] sm:$0xf]
      %v806 = vld [vmem:[%s7 + $0x18] sm:$0xf]
      %v807 = vld [vmem:[%s7 + $0x1c] sm:$0xf]
      %v808 = vld [vmem:[%s7 + $0x20] sm:$0xf]
      %v809 = vld [vmem:[%s7 + $0x24] sm:$0xf]
      %v810 = vld [vmem:[%s7 + $0x28] sm:$0xf]
      %v811 = vld [vmem:[%s7 + $0x2c] sm:$0xf]
      %v812 = vld [vmem:[%s7 + $0x30] sm:$0xf]
      %v813 = vld [vmem:[%s7 + $0x34] sm:$0xf]
      %v814 = vld [vmem:[%s7 + $0x38] sm:$0xf]
      %v815 = vld [vmem:[%s7 + $0x3c] sm:$0xf]
      %v816 = vld [vmem:[%s8] sm:$0x1]
      %v818 = vlaneseq
      %v819 = vshrl.u32 %v818, 7
      %v820 = vsub.s32 0, %v819
      %v821 = vrot.slane %v816, %v820
      %v839 = vunpack.c.l.b16 %v800
      %v840 = vunpack.c.l.b16 %v801
      %v841 = vunpack.c.l.b16 %v802
      %v842 = vunpack.c.l.b16 %v803
      %v843 = vunpack.c.l.b16 %v804
      %v844 = vunpack.c.l.b16 %v805
      %v845 = vunpack.c.l.b16 %v806
      %v846 = vunpack.c.l.b16 %v807
      %v847 = vunpack.c.l.b16 %v808
      %v848 = vunpack.c.l.b16 %v809
      %v849 = vunpack.c.l.b16 %v810
      %v850 = vunpack.c.l.b16 %v811
      %v851 = vunpack.c.l.b16 %v812
      %v852 = vunpack.c.l.b16 %v813
      %v853 = vunpack.c.l.b16 %v814
      %v854 = vunpack.c.l.b16 %v815
      %v855 = vpack.c.b16 %v840, %v839
      %v856 = vpack.c.b16 %v842, %v841
      %v857 = vpack.c.b16 %v844, %v843
      %v858 = vpack.c.b16 %v846, %v845
      %v859 = vpack.c.b16 %v848, %v847
      %v860 = vpack.c.b16 %v850, %v849
      %v861 = vpack.c.b16 %v852, %v851
      %v862 = vpack.c.b16 %v854, %v853
      %871 = vmatprep.subr.bf16.mxu0 0
      %872 = vmatpush1.bf16.msra.mxu0 %v855
      %873 = vmatprep.subr.bf16.mxu0 0
      %874 = vmatpush1.bf16.msra.mxu0 %v856
      %875 = vmatprep.subr.bf16.mxu0 0
      %876 = vmatpush1.bf16.msra.mxu0 %v857
      %877 = vmatprep.subr.bf16.mxu0 0
      %878 = vmatpush1.bf16.msra.mxu0 %v858
      %879 = vmatprep.subr.bf16.mxu0 0
      %880 = vmatpush1.bf16.msra.mxu0 %v859
      %881 = vmatprep.subr.bf16.mxu0 0
      %882 = vmatpush1.bf16.msra.mxu0 %v860
      %883 = vmatprep.subr.bf16.mxu0 0
      %884 = vmatpush1.bf16.msra.mxu0 %v861
      %885 = vmatprep.subr.bf16.mxu0 0
      %886 = vmatpush1.bf16.msra.mxu0 %v862
      %887 = vmatprep.subr.bf16.mxu0 0
      %888 = vmatpush1.bf16.msra.mxu0 0
      %889 = vmatprep.subr.bf16.mxu0 0
      %890 = vmatpush1.bf16.msra.mxu0 0
      %891 = vmatprep.subr.bf16.mxu0 0
      %892 = vmatpush1.bf16.msra.mxu0 0
      %893 = vmatprep.subr.bf16.mxu0 0
      %894 = vmatpush1.bf16.msra.mxu0 0
      %895 = vmatprep.subr.bf16.mxu0 0
      %896 = vmatpush1.bf16.msra.mxu0 0
      %897 = vmatprep.subr.bf16.mxu0 0
      %898 = vmatpush1.bf16.msra.mxu0 0
      %899 = vmatprep.subr.bf16.mxu0 0
      %900 = vmatpush1.bf16.msra.mxu0 0
      %901 = vmatprep.subr.bf16.mxu0 0
      %902 = vmatpush1.bf16.msra.mxu0 0
      %903 = vmatprep.mubr.bf16.mxu0 0
      %904 = vmatmul.mubr.bf16.gmra.mrb[0].mxu0 %v792
      %v905 = vpop.f32.mrb[0].mxu0
      %v906 = vadd.f32 %v821, %v905
      %v907 = vpop.f32.mrb[0].mxu0
      %v908 = vpop.f32.mrb[0].mxu0
      %v909 = vadd.f32 %v821, %v908
      %v910 = vpop.f32.mrb[0].mxu0
      %911 = vmatprep.mubr.bf16.mxu0 0
      %912 = vmatmul.mubr.bf16.gmra.mrb[0].mxu0 %v793
      %v913 = vpop.f32.mrb[0].mxu0
      %v914 = vadd.f32 %v821, %v913
      %v915 = vpop.f32.mrb[0].mxu0
      %v916 = vpop.f32.mrb[0].mxu0
      %v917 = vadd.f32 %v821, %v916
      %v918 = vpop.f32.mrb[0].mxu0
      %919 = vmatprep.mubr.bf16.mxu0 0
      %920 = vmatmul.mubr.bf16.gmra.mrb[0].mxu0 %v794
      %v921 = vpop.f32.mrb[0].mxu0
      %v922 = vadd.f32 %v821, %v921
      %v923 = vpop.f32.mrb[0].mxu0
      %v924 = vpop.f32.mrb[0].mxu0
      %v925 = vadd.f32 %v821, %v924
      %v926 = vpop.f32.mrb[0].mxu0
      %927 = vmatprep.mubr.bf16.mxu0 0
      %928 = vmatmul.mubr.bf16.gmra.mrb[0].mxu0 %v795
      %v929 = vpop.f32.mrb[0].mxu0
      %v930 = vadd.f32 %v821, %v929
      %v931 = vpop.f32.mrb[0].mxu0
      %v932 = vpop.f32.mrb[0].mxu0
      %v933 = vadd.f32 %v821, %v932
      %v934 = vpop.f32.mrb[0].mxu0
      %935 = vmatprep.mubr.bf16.mxu0 0
      %936 = vmatmul.mubr.bf16.gmra.mrb[0].mxu0 %v796
      %v937 = vpop.f32.mrb[0].mxu0
      %v938 = vadd.f32 %v821, %v937
      %v939 = vpop.f32.mrb[0].mxu0
      %v940 = vpop.f32.mrb[0].mxu0
      %v941 = vadd.f32 %v821, %v940
      %v942 = vpop.f32.mrb[0].mxu0
      %943 = vmatprep.mubr.bf16.mxu0 0
      %944 = vmatmul.mubr.bf16.gmra.mrb[0].mxu0 %v797
      %v945 = vpop.f32.mrb[0].mxu0
      %v946 = vadd.f32 %v821, %v945
      %v947 = vpop.f32.mrb[0].mxu0
      %v948 = vpop.f32.mrb[0].mxu0
      %v949 = vadd.f32 %v821, %v948
      %v950 = vpop.f32.mrb[0].mxu0
      %951 = vmatprep.mubr.bf16.mxu0 0
      %952 = vmatmul.mubr.bf16.gmra.mrb[0].mxu0 %v798
      %v953 = vpop.f32.mrb[0].mxu0
      %v954 = vadd.f32 %v821, %v953
      %v955 = vpop.f32.mrb[0].mxu0
      %v956 = vpop.f32.mrb[0].mxu0
      %v957 = vadd.f32 %v821, %v956
      %v958 = vpop.f32.mrb[0].mxu0
      %959 = vmatprep.mubr.bf16.mxu0 0
      %960 = vmatmul.mubr.bf16.gmra.mrb[0].mxu0 %v799
      %v961 = vpop.f32.mrb[0].mxu0
      %v962 = vadd.f32 %v821, %v961
      %v963 = vpop.f32.mrb[0].mxu0
      %v964 = vpop.f32.mrb[0].mxu0
      %v965 = vadd.f32 %v821, %v964
      %v966 = vpop.f32.mrb[0].mxu0
      %967 = vdwg.mxu0
      %vm968 = vcmask 64512
      %969 = vst.msk [vmem:[%s334] sm:$0xff] %vm968, %v906
      %970 = vst.msk [vmem:[%s334 + $0x8] sm:$0xff] %vm968, %v909
      %971 = vst.msk [vmem:[%s334 + $0x10] sm:$0xff] %vm968, %v914
      %972 = vst.msk [vmem:[%s334 + $0x18] sm:$0xff] %vm968, %v917
      %973 = vst.msk [vmem:[%s334 + $0x20] sm:$0xff] %vm968, %v922
      %974 = vst.msk [vmem:[%s334 + $0x28] sm:$0xff] %vm968, %v925
      %975 = vst.msk [vmem:[%s334 + $0x30] sm:$0xff] %vm968, %v930
      %976 = vst.msk [vmem:[%s334 + $0x38] sm:$0xff] %vm968, %v933
      %977 = vst.msk [vmem:[%s334 + $0x40] sm:$0xff] %vm968, %v938
      %978 = vst.msk [vmem:[%s334 + $0x48] sm:$0xff] %vm968, %v941
      %979 = vst.msk [vmem:[%s334 + $0x50] sm:$0xff] %vm968, %v946
      %980 = vst.msk [vmem:[%s334 + $0x58] sm:$0xff] %vm968, %v949
      %981 = vst.msk [vmem:[%s334 + $0x60] sm:$0xff] %vm968, %v954
      %982 = vst.msk [vmem:[%s334 + $0x68] sm:$0xff] %vm968, %v957
      %983 = vst.msk [vmem:[%s334 + $0x70] sm:$0xff] %vm968, %v962
      %984 = vst.msk [vmem:[%s334 + $0x78] sm:$0xff] %vm968, %v965
      %s985 = smul.u32 16, %s20
      %p986 = scmp.lt.s32.totalorder %s985, 31
      %s987 = scalar_select %p986, %s985, 31
      %s988 = smul.addr %s987, 8
      %s989 = scalar_lea.vmem %s9, %s988
      // Predicated region
      $region57: #{tpu_custom_call.1} parent=55 // pred_check
        %p990 = pneg %p232
      $region58: #{tpu_custom_call.1} parent=55 // pred_check_branch
        %992 = sbr.rel (%p990) target = $region60
      $region59: #{tpu_custom_call.1} parent=55 // pred_region
        %s993 = smul.u32 16, %s20
      $region60: #{tpu_custom_call.1} parent=55 // pred_fallthru
        _
    $region56: #{tpu_custom_call.1} parent=5 // pred_fallthru
      _
    %p994 = scmp.le.s32.totalorder 2, %s15
    // Predicated region
    $region61: #{tpu_custom_call.1} parent=5 // pred_check
      %p995 = pneg %p994
    $region62: #{tpu_custom_call.1} parent=5 // pred_check_branch
      %997 = sbr.rel (%p995) target = $region64
    $region63: #{tpu_custom_call.1} parent=5 // pred_region
      %s998 = ssub.s32 %s15, 2
      // Predicated region
      $region65: #{tpu_custom_call.1} parent=63 // pred_check
        %p999 = pneg %p238
      $region66: #{tpu_custom_call.1} parent=63 // pred_check_branch
        %1001 = sbr.rel (%p999) target = $region68
      $region67: #{tpu_custom_call.1} parent=63 // pred_region
        %s1002 = smul.u32 16, %s21
        %p1003 = scmp.lt.s32.totalorder %s1002, 31
        %s1004 = scalar_select %p1003, %s1002, 31
        %s1005 = smul.addr %s1004, 8
        %s1006 = scalar_lea.vmem %s9, %s1005
      $region68: #{tpu_custom_call.1} parent=63 // pred_fallthru
        _
    $region64: #{tpu_custom_call.1} parent=5 // pred_fallthru
      _
  $region6: #{tpu_custom_call.1} parent=0 // loop_footer
    %s19 = sadd.s32 1, %s15
  $region7: #{tpu_custom_call.1} parent=0 // loop_footer_branch
    %14 = sbr.rel target = $region3
  $region8: #{tpu_custom_call.1} parent=0 // loop_exit
    _

</llo_original>
